<compile_context>
chip_gen: v7x
topology: tpu7x:2x2x1
jax: 0.10.0
libtpu: 0.0.40
codegen_flags: <defaults>
</compile_context>

<pallas_src>
import functools

import jax
import jax.numpy as jnp
import numpy as np
from jax import lax
from jax.experimental import pallas as pl
from jax.experimental.pallas import tpu as pltpu


def _attention_lstm_kernel(
    x_ref,       # (S*B, I)   time-major flattened input (row = t*B + b)
    h0_ref,      # (1, B, H)
    c0_ref,      # (1, B, H)
    wih_ref,     # (I, 4H)    fused input->gate weights, gate order i, f, g, o
    whh_ref,     # (H, 4H)    fused hidden->gate weights
    b_ref,       # (1, 4H)    fused bias (b_ih + b_hh)
    ww_ref,      # (H, H)     word_weight
    wb_ref,      # (1, H)     word_bias
    cwt_ref,     # (1, H)     context_weight, pre-transposed
    out_ref,     # (3, B, H)  packed [attention-pooled output, h_N, c_N]
    *, S, B, H,
):
    H4 = 4 * H

    # ---- input projection for every timestep: one tall MXU matmul, bias folded in.
    xw = (jnp.dot(x_ref[...], wih_ref[...], preferred_element_type=jnp.float32)
          + b_ref[...])                                              # (S*B, 4H)

    whh = whh_ref[...]                                               # (H, 4H)
    # Lane mask selecting the "g" gate block (plain tanh); the rest gets sigmoid,
    # realized as 0.5*tanh(x/2)+0.5 so only ONE transcendental pass is needed.
    lane = lax.broadcasted_iota(jnp.int32, (B, H4), 1)
    g_mask = (lane >= 2 * H) & (lane < 3 * H)

    h = h0_ref[0]                                                    # (B, H), in vregs
    c = c0_ref[0]
    hs = []

    # ---- LSTM recurrence, fully unrolled (S static): one (B,4H) matmul + one tanh
    #      pass per step; h/c and the whole output sequence stay in vregs.
    # TODO(synk): on v5e/v6e, hold `whh` in MXU weight registers across the loop
    # via pltpu.matmul_push_rhs / matmul_acc_lhs / matmul_pop (and on v7x seed the
    # MRB accumulator with the xw slice); kept as jnp.dot for lowering robustness.
    for t in range(S):
        r0 = t * B
        gates = xw[r0:r0 + B, :] + jnp.dot(
            h, whh, preferred_element_type=jnp.float32)              # (B, 4H)
        y = jnp.where(g_mask, gates, 0.5 * gates)
        th = jnp.tanh(y)
        act = jnp.where(g_mask, th, 0.5 * th + 0.5)                  # tanh / sigmoid
        i_g = act[:, 0:H]
        f_g = act[:, H:2 * H]
        g_g = act[:, 2 * H:3 * H]
        o_g = act[:, 3 * H:]
        c = f_g * c + i_g * g_g
        h = o_g * jnp.tanh(c)
        hs.append(h)

    out_ref[1] = h                                                   # final hidden
    out_ref[2] = c                                                   # final cell

    # ---- word attention, batched over the whole sequence (off the serial path).
    f_all = jnp.concatenate(hs, axis=0)                              # (S*B, H), vregs
    u = jnp.tanh(jnp.dot(f_all, ww_ref[...],
                         preferred_element_type=jnp.float32) + wb_ref[...])
    scores = jnp.tanh(jnp.sum(u * cwt_ref[...], axis=-1, keepdims=True))  # (S*B, 1)

    # Softmax over the S positions of each batch element (rows with r % B == b).
    # scores are tanh-bounded in (-1, 1), so exp needs no max shift.
    e = jnp.exp(scores)                                              # (S*B, 1)

    # One-hot selector sel[b, t*B + b] = 1, generated in-kernel (no extra input DMA).
    row = lax.broadcasted_iota(jnp.int32, (B, S * B), 0)
    col = lax.broadcasted_iota(jnp.int32, (B, S * B), 1)
    if B & (B - 1) == 0:
        col_b = jnp.bitwise_and(col, B - 1)
    else:
        col_b = col % B
    sel = (col_b == row).astype(jnp.float32)                         # (B, S*B)

    # Fused numerator/denominator: single (B, S*B) x (S*B, H+1) MXU matmul; the
    # extra lane column carrying `e` is free (H already pads to 128 lanes).
    nd = jnp.dot(sel, jnp.concatenate([e * f_all, e], axis=-1),
                 preferred_element_type=jnp.float32)                 # (B, H+1)
    out_ref[0] = nd[:, 0:H] / nd[:, H:H + 1]


def attention_model_forward(sequence, hidden_state, params):
    """Pallas implementation of AttentionModel.forward (LSTM, unidirectional)."""
    h0, c0 = hidden_state
    S, B, I = sequence.shape
    H = h0.shape[-1]

    # Layout plumbing done once in XLA (outside the kernel):
    #  * fuse per-gate (i, f, g, o) LSTM parameters into single (., 4H) operands,
    #  * transpose the context weight to (1, H),
    #  * flatten the sequence time-major to (S*B, I).
    wih_f = jnp.concatenate([params["wih_t"][g] for g in range(4)], axis=-1)   # (I, 4H)
    whh_f = jnp.concatenate([params["whh_t"][g] for g in range(4)], axis=-1)   # (H, 4H)
    b_f = jnp.concatenate([params["bias"][g] for g in range(4)], axis=-1)      # (1, 4H)
    cw_t = params["context_weight"].T                                          # (1, H)
    x2d = sequence.reshape(S * B, I)                                           # row = t*B + b

    kernel = functools.partial(_attention_lstm_kernel, S=S, B=B, H=H)
    vmem = pl.BlockSpec(memory_space=pltpu.MemorySpace.VMEM)

    # TODO(synk): for many independent (sequence, h0, c0) problems, add a leading
    # "parallel" grid axis (whole problem per grid step) to amortize launch/DMA
    # overhead and engage v7x's second TensorCore; unnecessary for a single problem.
    packed = pl.pallas_call(
        kernel,
        out_shape=jax.ShapeDtypeStruct((3, B, H), jnp.float32),
        in_specs=[vmem] * 9,
        out_specs=vmem,
    )(x2d, h0, c0, wih_f, whh_f, b_f,
      params["word_weight"], params["word_bias"], cw_t)

    out = packed[0:1]
    hN = packed[1:2]
    cN = packed[2:3]
    return out, (hN, cN)


def reference_forward(sequence, hidden_state, params):
    """Pure-JAX reference mirroring the PyTorch module (for verification)."""
    h0, c0 = hidden_state
    wih_t, whh_t, b = params["wih_t"], params["whh_t"], params["bias"]
    ww, wb, cw = params["word_weight"], params["word_bias"], params["context_weight"]

    def step(carry, x_t):
        h, c = carry
        i = jax.nn.sigmoid(x_t @ wih_t[0] + h @ whh_t[0] + b[0])
        f = jax.nn.sigmoid(x_t @ wih_t[1] + h @ whh_t[1] + b[1])
        g = jnp.tanh(x_t @ wih_t[2] + h @ whh_t[2] + b[2])
        o = jax.nn.sigmoid(x_t @ wih_t[3] + h @ whh_t[3] + b[3])
        c_new = f * c + i * g
        h_new = o * jnp.tanh(c_new)
        return (h_new, c_new), h_new

    (hN, cN), f_out = jax.lax.scan(step, (h0[0], c0[0]), sequence)   # f_out: (S, B, H)
    u = jnp.tanh(jnp.einsum("sbh,hk->sbk", f_out, ww) + wb)
    scores = jnp.tanh(jnp.einsum("sbh,hk->sbk", u, cw))[:, :, 0]     # (S, B)
    attn = jax.nn.softmax(scores.T, axis=-1).T                       # softmax over S
    out = jnp.sum(f_out * attn[:, :, None], axis=0)[None]
    return out, (hN[None], cN[None])


if __name__ == "__main__":
    S, B, I, H = 8, 2, 16, 32   # seq, batch, input_size, hidden_size

    key = jax.random.PRNGKey(0)
    ks = jax.random.split(key, 9)

    k_lstm = 1.0 / np.sqrt(H)
    params = {
        # PyTorch LSTM weights, stored pre-transposed & split per gate (i, f, g, o)
        "wih_t": jax.random.uniform(ks[0], (4, I, H), jnp.float32, -k_lstm, k_lstm),
        "whh_t": jax.random.uniform(ks[1], (4, H, H), jnp.float32, -k_lstm, k_lstm),
        "bias": jax.random.uniform(ks[2], (4, 1, H), jnp.float32, -k_lstm, k_lstm),
        # attention parameters: normal(0, 0.05) as in the module
        "word_weight": 0.05 * jax.random.normal(ks[3], (H, H), jnp.float32),
        "word_bias": 0.05 * jax.random.normal(ks[4], (1, H), jnp.float32),
        "context_weight": 0.05 * jax.random.normal(ks[5], (H, 1), jnp.float32),
    }

    sequence = jax.random.normal(ks[6], (S, B, I), jnp.float32)
    h0 = jax.random.normal(ks[7], (1, B, H), jnp.float32)
    c0 = jax.random.normal(ks[8], (1, B, H), jnp.float32)

    out, (hN, cN) = attention_model_forward(sequence, (h0, c0), params)
    out, hN, cN = jax.block_until_ready((out, hN, cN))

    ref_out, (ref_hN, ref_cN) = reference_forward(sequence, (h0, c0), params)
    np.testing.assert_allclose(np.asarray(out), np.asarray(ref_out), rtol=1e-4, atol=1e-4)
    np.testing.assert_allclose(np.asarray(hN), np.asarray(ref_hN), rtol=1e-4, atol=1e-4)
    np.testing.assert_allclose(np.asarray(cN), np.asarray(ref_cN), rtol=1e-4, atol=1e-4)

    # TODO(synk): bidirectional / GRU constructor variants not implemented; this
    # kernel realizes the use_lstm=True, bidirectional=False configuration.
    print("KERNEL_OK")
</pallas_src>

<mosaic_0001>
module attributes {stable_mosaic.version = 11 : i64} {
  func.func @_attention_lstm_kernel(%arg0: memref<16x16xf32, #tpu.memory_space<vmem>>, %arg1: memref<1x2x32xf32, #tpu.memory_space<vmem>>, %arg2: memref<1x2x32xf32, #tpu.memory_space<vmem>>, %arg3: memref<16x128xf32, #tpu.memory_space<vmem>>, %arg4: memref<32x128xf32, #tpu.memory_space<vmem>>, %arg5: memref<1x128xf32, #tpu.memory_space<vmem>>, %arg6: memref<32x32xf32, #tpu.memory_space<vmem>>, %arg7: memref<1x32xf32, #tpu.memory_space<vmem>>, %arg8: memref<1x32xf32, #tpu.memory_space<vmem>>, %arg9: memref<3x2x32xf32, #tpu.memory_space<vmem>>) attributes {dimension_semantics = [], scalar_prefetch = 0 : i64, scratch_operands = 0 : i64, tpu.core_type = #tpu.core_type<tc>} {
    %c0 = arith.constant 0 : index
    %c0_0 = arith.constant 0 : index
    %0 = vector.load %arg0[%c0, %c0_0] : memref<16x16xf32, #tpu.memory_space<vmem>>, vector<16x16xf32>
    %c0_1 = arith.constant 0 : index
    %c0_2 = arith.constant 0 : index
    %1 = vector.load %arg3[%c0_1, %c0_2] : memref<16x128xf32, #tpu.memory_space<vmem>>, vector<16x128xf32>
    %cst = arith.constant dense<0.000000e+00> : vector<16x128xf32>
    %2 = tpu.matmul %0, %1, %cst {dimension_numbers = #tpu.dot_dimension_numbers<[1], [0], [0], [1], [0, 0, 1, 1], [], []>} : vector<16x16xf32>, vector<16x128xf32>, vector<16x128xf32> -> vector<16x128xf32>
    %c0_3 = arith.constant 0 : index
    %c0_4 = arith.constant 0 : index
    %3 = vector.load %arg5[%c0_3, %c0_4] : memref<1x128xf32, #tpu.memory_space<vmem>>, vector<1x128xf32>
    %4 = vector.broadcast %3 : vector<1x128xf32> to vector<16x128xf32>
    %5 = arith.addf %2, %4 : vector<16x128xf32>
    %c0_5 = arith.constant 0 : index
    %c0_6 = arith.constant 0 : index
    %6 = vector.load %arg4[%c0_5, %c0_6] : memref<32x128xf32, #tpu.memory_space<vmem>>, vector<32x128xf32>
    %7 = tpu.iota {dimensions = array<i32: 1>} : vector<2x128xi32>
    %c64_i32 = arith.constant 64 : i32
    %8 = vector.broadcast %c64_i32 : i32 to vector<2x128xi32>
    %9 = arith.cmpi sge, %7, %8 : vector<2x128xi32>
    %c96_i32 = arith.constant 96 : i32
    %10 = vector.broadcast %c96_i32 : i32 to vector<2x128xi32>
    %11 = arith.cmpi slt, %7, %10 : vector<2x128xi32>
    %12 = arith.andi %9, %11 : vector<2x128xi1>
    %c0_7 = arith.constant 0 : index
    %c0_8 = arith.constant 0 : index
    %c0_9 = arith.constant 0 : index
    %13 = vector.load %arg1[%c0_7, %c0_8, %c0_9] : memref<1x2x32xf32, #tpu.memory_space<vmem>>, vector<1x2x32xf32>
    %14 = vector.shape_cast %13 : vector<1x2x32xf32> to vector<2x32xf32>
    %c0_10 = arith.constant 0 : index
    %c0_11 = arith.constant 0 : index
    %c0_12 = arith.constant 0 : index
    %15 = vector.load %arg2[%c0_10, %c0_11, %c0_12] : memref<1x2x32xf32, #tpu.memory_space<vmem>>, vector<1x2x32xf32>
    %16 = vector.shape_cast %15 : vector<1x2x32xf32> to vector<2x32xf32>
    %17 = vector.extract_strided_slice %5 {offsets = [0, 0], sizes = [2, 128], strides = [1, 1]} : vector<16x128xf32> to vector<2x128xf32>
    %cst_13 = arith.constant dense<0.000000e+00> : vector<2x128xf32>
    %18 = tpu.matmul %14, %6, %cst_13 {dimension_numbers = #tpu.dot_dimension_numbers<[1], [0], [0], [1], [0, 0, 1, 1], [], []>} : vector<2x32xf32>, vector<32x128xf32>, vector<2x128xf32> -> vector<2x128xf32>
    %19 = arith.addf %17, %18 : vector<2x128xf32>
    %cst_14 = arith.constant 5.000000e-01 : f32
    %20 = vector.broadcast %cst_14 : f32 to vector<2x128xf32>
    %21 = arith.mulf %20, %19 : vector<2x128xf32>
    %22 = arith.select %12, %19, %21 : vector<2x128xi1>, vector<2x128xf32>
    %23 = math.tanh %22 : vector<2x128xf32>
    %cst_15 = arith.constant 5.000000e-01 : f32
    %24 = vector.broadcast %cst_15 : f32 to vector<2x128xf32>
    %25 = arith.mulf %24, %23 : vector<2x128xf32>
    %cst_16 = arith.constant 5.000000e-01 : f32
    %26 = vector.broadcast %cst_16 : f32 to vector<2x128xf32>
    %27 = arith.addf %25, %26 : vector<2x128xf32>
    %28 = arith.select %12, %23, %27 : vector<2x128xi1>, vector<2x128xf32>
    %29 = vector.extract_strided_slice %28 {offsets = [0, 0], sizes = [2, 32], strides = [1, 1]} : vector<2x128xf32> to vector<2x32xf32>
    %30 = vector.extract_strided_slice %28 {offsets = [0, 32], sizes = [2, 32], strides = [1, 1]} : vector<2x128xf32> to vector<2x32xf32>
    %31 = vector.extract_strided_slice %28 {offsets = [0, 64], sizes = [2, 32], strides = [1, 1]} : vector<2x128xf32> to vector<2x32xf32>
    %32 = vector.extract_strided_slice %28 {offsets = [0, 96], sizes = [2, 32], strides = [1, 1]} : vector<2x128xf32> to vector<2x32xf32>
    %33 = arith.mulf %30, %16 : vector<2x32xf32>
    %34 = arith.mulf %29, %31 : vector<2x32xf32>
    %35 = arith.addf %33, %34 : vector<2x32xf32>
    %36 = math.tanh %35 : vector<2x32xf32>
    %37 = arith.mulf %32, %36 : vector<2x32xf32>
    %38 = vector.extract_strided_slice %5 {offsets = [2, 0], sizes = [2, 128], strides = [1, 1]} : vector<16x128xf32> to vector<2x128xf32>
    %cst_17 = arith.constant dense<0.000000e+00> : vector<2x128xf32>
    %39 = tpu.matmul %37, %6, %cst_17 {dimension_numbers = #tpu.dot_dimension_numbers<[1], [0], [0], [1], [0, 0, 1, 1], [], []>} : vector<2x32xf32>, vector<32x128xf32>, vector<2x128xf32> -> vector<2x128xf32>
    %40 = arith.addf %38, %39 : vector<2x128xf32>
    %cst_18 = arith.constant 5.000000e-01 : f32
    %41 = vector.broadcast %cst_18 : f32 to vector<2x128xf32>
    %42 = arith.mulf %41, %40 : vector<2x128xf32>
    %43 = arith.select %12, %40, %42 : vector<2x128xi1>, vector<2x128xf32>
    %44 = math.tanh %43 : vector<2x128xf32>
    %cst_19 = arith.constant 5.000000e-01 : f32
    %45 = vector.broadcast %cst_19 : f32 to vector<2x128xf32>
    %46 = arith.mulf %45, %44 : vector<2x128xf32>
    %cst_20 = arith.constant 5.000000e-01 : f32
    %47 = vector.broadcast %cst_20 : f32 to vector<2x128xf32>
    %48 = arith.addf %46, %47 : vector<2x128xf32>
    %49 = arith.select %12, %44, %48 : vector<2x128xi1>, vector<2x128xf32>
    %50 = vector.extract_strided_slice %49 {offsets = [0, 0], sizes = [2, 32], strides = [1, 1]} : vector<2x128xf32> to vector<2x32xf32>
    %51 = vector.extract_strided_slice %49 {offsets = [0, 32], sizes = [2, 32], strides = [1, 1]} : vector<2x128xf32> to vector<2x32xf32>
    %52 = vector.extract_strided_slice %49 {offsets = [0, 64], sizes = [2, 32], strides = [1, 1]} : vector<2x128xf32> to vector<2x32xf32>
    %53 = vector.extract_strided_slice %49 {offsets = [0, 96], sizes = [2, 32], strides = [1, 1]} : vector<2x128xf32> to vector<2x32xf32>
    %54 = arith.mulf %51, %35 : vector<2x32xf32>
    %55 = arith.mulf %50, %52 : vector<2x32xf32>
    %56 = arith.addf %54, %55 : vector<2x32xf32>
    %57 = math.tanh %56 : vector<2x32xf32>
    %58 = arith.mulf %53, %57 : vector<2x32xf32>
    %59 = vector.extract_strided_slice %5 {offsets = [4, 0], sizes = [2, 128], strides = [1, 1]} : vector<16x128xf32> to vector<2x128xf32>
    %cst_21 = arith.constant dense<0.000000e+00> : vector<2x128xf32>
    %60 = tpu.matmul %58, %6, %cst_21 {dimension_numbers = #tpu.dot_dimension_numbers<[1], [0], [0], [1], [0, 0, 1, 1], [], []>} : vector<2x32xf32>, vector<32x128xf32>, vector<2x128xf32> -> vector<2x128xf32>
    %61 = arith.addf %59, %60 : vector<2x128xf32>
    %cst_22 = arith.constant 5.000000e-01 : f32
    %62 = vector.broadcast %cst_22 : f32 to vector<2x128xf32>
    %63 = arith.mulf %62, %61 : vector<2x128xf32>
    %64 = arith.select %12, %61, %63 : vector<2x128xi1>, vector<2x128xf32>
    %65 = math.tanh %64 : vector<2x128xf32>
    %cst_23 = arith.constant 5.000000e-01 : f32
    %66 = vector.broadcast %cst_23 : f32 to vector<2x128xf32>
    %67 = arith.mulf %66, %65 : vector<2x128xf32>
    %cst_24 = arith.constant 5.000000e-01 : f32
    %68 = vector.broadcast %cst_24 : f32 to vector<2x128xf32>
    %69 = arith.addf %67, %68 : vector<2x128xf32>
    %70 = arith.select %12, %65, %69 : vector<2x128xi1>, vector<2x128xf32>
    %71 = vector.extract_strided_slice %70 {offsets = [0, 0], sizes = [2, 32], strides = [1, 1]} : vector<2x128xf32> to vector<2x32xf32>
    %72 = vector.extract_strided_slice %70 {offsets = [0, 32], sizes = [2, 32], strides = [1, 1]} : vector<2x128xf32> to vector<2x32xf32>
    %73 = vector.extract_strided_slice %70 {offsets = [0, 64], sizes = [2, 32], strides = [1, 1]} : vector<2x128xf32> to vector<2x32xf32>
    %74 = vector.extract_strided_slice %70 {offsets = [0, 96], sizes = [2, 32], strides = [1, 1]} : vector<2x128xf32> to vector<2x32xf32>
    %75 = arith.mulf %72, %56 : vector<2x32xf32>
    %76 = arith.mulf %71, %73 : vector<2x32xf32>
    %77 = arith.addf %75, %76 : vector<2x32xf32>
    %78 = math.tanh %77 : vector<2x32xf32>
    %79 = arith.mulf %74, %78 : vector<2x32xf32>
    %80 = vector.extract_strided_slice %5 {offsets = [6, 0], sizes = [2, 128], strides = [1, 1]} : vector<16x128xf32> to vector<2x128xf32>
    %cst_25 = arith.constant dense<0.000000e+00> : vector<2x128xf32>
    %81 = tpu.matmul %79, %6, %cst_25 {dimension_numbers = #tpu.dot_dimension_numbers<[1], [0], [0], [1], [0, 0, 1, 1], [], []>} : vector<2x32xf32>, vector<32x128xf32>, vector<2x128xf32> -> vector<2x128xf32>
    %82 = arith.addf %80, %81 : vector<2x128xf32>
    %cst_26 = arith.constant 5.000000e-01 : f32
    %83 = vector.broadcast %cst_26 : f32 to vector<2x128xf32>
    %84 = arith.mulf %83, %82 : vector<2x128xf32>
    %85 = arith.select %12, %82, %84 : vector<2x128xi1>, vector<2x128xf32>
    %86 = math.tanh %85 : vector<2x128xf32>
    %cst_27 = arith.constant 5.000000e-01 : f32
    %87 = vector.broadcast %cst_27 : f32 to vector<2x128xf32>
    %88 = arith.mulf %87, %86 : vector<2x128xf32>
    %cst_28 = arith.constant 5.000000e-01 : f32
    %89 = vector.broadcast %cst_28 : f32 to vector<2x128xf32>
    %90 = arith.addf %88, %89 : vector<2x128xf32>
    %91 = arith.select %12, %86, %90 : vector<2x128xi1>, vector<2x128xf32>
    %92 = vector.extract_strided_slice %91 {offsets = [0, 0], sizes = [2, 32], strides = [1, 1]} : vector<2x128xf32> to vector<2x32xf32>
    %93 = vector.extract_strided_slice %91 {offsets = [0, 32], sizes = [2, 32], strides = [1, 1]} : vector<2x128xf32> to vector<2x32xf32>
    %94 = vector.extract_strided_slice %91 {offsets = [0, 64], sizes = [2, 32], strides = [1, 1]} : vector<2x128xf32> to vector<2x32xf32>
    %95 = vector.extract_strided_slice %91 {offsets = [0, 96], sizes = [2, 32], strides = [1, 1]} : vector<2x128xf32> to vector<2x32xf32>
    %96 = arith.mulf %93, %77 : vector<2x32xf32>
    %97 = arith.mulf %92, %94 : vector<2x32xf32>
    %98 = arith.addf %96, %97 : vector<2x32xf32>
    %99 = math.tanh %98 : vector<2x32xf32>
    %100 = arith.mulf %95, %99 : vector<2x32xf32>
    %101 = vector.extract_strided_slice %5 {offsets = [8, 0], sizes = [2, 128], strides = [1, 1]} : vector<16x128xf32> to vector<2x128xf32>
    %cst_29 = arith.constant dense<0.000000e+00> : vector<2x128xf32>
    %102 = tpu.matmul %100, %6, %cst_29 {dimension_numbers = #tpu.dot_dimension_numbers<[1], [0], [0], [1], [0, 0, 1, 1], [], []>} : vector<2x32xf32>, vector<32x128xf32>, vector<2x128xf32> -> vector<2x128xf32>
    %103 = arith.addf %101, %102 : vector<2x128xf32>
    %cst_30 = arith.constant 5.000000e-01 : f32
    %104 = vector.broadcast %cst_30 : f32 to vector<2x128xf32>
    %105 = arith.mulf %104, %103 : vector<2x128xf32>
    %106 = arith.select %12, %103, %105 : vector<2x128xi1>, vector<2x128xf32>
    %107 = math.tanh %106 : vector<2x128xf32>
    %cst_31 = arith.constant 5.000000e-01 : f32
    %108 = vector.broadcast %cst_31 : f32 to vector<2x128xf32>
    %109 = arith.mulf %108, %107 : vector<2x128xf32>
    %cst_32 = arith.constant 5.000000e-01 : f32
    %110 = vector.broadcast %cst_32 : f32 to vector<2x128xf32>
    %111 = arith.addf %109, %110 : vector<2x128xf32>
    %112 = arith.select %12, %107, %111 : vector<2x128xi1>, vector<2x128xf32>
    %113 = vector.extract_strided_slice %112 {offsets = [0, 0], sizes = [2, 32], strides = [1, 1]} : vector<2x128xf32> to vector<2x32xf32>
    %114 = vector.extract_strided_slice %112 {offsets = [0, 32], sizes = [2, 32], strides = [1, 1]} : vector<2x128xf32> to vector<2x32xf32>
    %115 = vector.extract_strided_slice %112 {offsets = [0, 64], sizes = [2, 32], strides = [1, 1]} : vector<2x128xf32> to vector<2x32xf32>
    %116 = vector.extract_strided_slice %112 {offsets = [0, 96], sizes = [2, 32], strides = [1, 1]} : vector<2x128xf32> to vector<2x32xf32>
    %117 = arith.mulf %114, %98 : vector<2x32xf32>
    %118 = arith.mulf %113, %115 : vector<2x32xf32>
    %119 = arith.addf %117, %118 : vector<2x32xf32>
    %120 = math.tanh %119 : vector<2x32xf32>
    %121 = arith.mulf %116, %120 : vector<2x32xf32>
    %122 = vector.extract_strided_slice %5 {offsets = [10, 0], sizes = [2, 128], strides = [1, 1]} : vector<16x128xf32> to vector<2x128xf32>
    %cst_33 = arith.constant dense<0.000000e+00> : vector<2x128xf32>
    %123 = tpu.matmul %121, %6, %cst_33 {dimension_numbers = #tpu.dot_dimension_numbers<[1], [0], [0], [1], [0, 0, 1, 1], [], []>} : vector<2x32xf32>, vector<32x128xf32>, vector<2x128xf32> -> vector<2x128xf32>
    %124 = arith.addf %122, %123 : vector<2x128xf32>
    %cst_34 = arith.constant 5.000000e-01 : f32
    %125 = vector.broadcast %cst_34 : f32 to vector<2x128xf32>
    %126 = arith.mulf %125, %124 : vector<2x128xf32>
    %127 = arith.select %12, %124, %126 : vector<2x128xi1>, vector<2x128xf32>
    %128 = math.tanh %127 : vector<2x128xf32>
    %cst_35 = arith.constant 5.000000e-01 : f32
    %129 = vector.broadcast %cst_35 : f32 to vector<2x128xf32>
    %130 = arith.mulf %129, %128 : vector<2x128xf32>
    %cst_36 = arith.constant 5.000000e-01 : f32
    %131 = vector.broadcast %cst_36 : f32 to vector<2x128xf32>
    %132 = arith.addf %130, %131 : vector<2x128xf32>
    %133 = arith.select %12, %128, %132 : vector<2x128xi1>, vector<2x128xf32>
    %134 = vector.extract_strided_slice %133 {offsets = [0, 0], sizes = [2, 32], strides = [1, 1]} : vector<2x128xf32> to vector<2x32xf32>
    %135 = vector.extract_strided_slice %133 {offsets = [0, 32], sizes = [2, 32], strides = [1, 1]} : vector<2x128xf32> to vector<2x32xf32>
    %136 = vector.extract_strided_slice %133 {offsets = [0, 64], sizes = [2, 32], strides = [1, 1]} : vector<2x128xf32> to vector<2x32xf32>
    %137 = vector.extract_strided_slice %133 {offsets = [0, 96], sizes = [2, 32], strides = [1, 1]} : vector<2x128xf32> to vector<2x32xf32>
    %138 = arith.mulf %135, %119 : vector<2x32xf32>
    %139 = arith.mulf %134, %136 : vector<2x32xf32>
    %140 = arith.addf %138, %139 : vector<2x32xf32>
    %141 = math.tanh %140 : vector<2x32xf32>
    %142 = arith.mulf %137, %141 : vector<2x32xf32>
    %143 = vector.extract_strided_slice %5 {offsets = [12, 0], sizes = [2, 128], strides = [1, 1]} : vector<16x128xf32> to vector<2x128xf32>
    %cst_37 = arith.constant dense<0.000000e+00> : vector<2x128xf32>
    %144 = tpu.matmul %142, %6, %cst_37 {dimension_numbers = #tpu.dot_dimension_numbers<[1], [0], [0], [1], [0, 0, 1, 1], [], []>} : vector<2x32xf32>, vector<32x128xf32>, vector<2x128xf32> -> vector<2x128xf32>
    %145 = arith.addf %143, %144 : vector<2x128xf32>
    %cst_38 = arith.constant 5.000000e-01 : f32
    %146 = vector.broadcast %cst_38 : f32 to vector<2x128xf32>
    %147 = arith.mulf %146, %145 : vector<2x128xf32>
    %148 = arith.select %12, %145, %147 : vector<2x128xi1>, vector<2x128xf32>
    %149 = math.tanh %148 : vector<2x128xf32>
    %cst_39 = arith.constant 5.000000e-01 : f32
    %150 = vector.broadcast %cst_39 : f32 to vector<2x128xf32>
    %151 = arith.mulf %150, %149 : vector<2x128xf32>
    %cst_40 = arith.constant 5.000000e-01 : f32
    %152 = vector.broadcast %cst_40 : f32 to vector<2x128xf32>
    %153 = arith.addf %151, %152 : vector<2x128xf32>
    %154 = arith.select %12, %149, %153 : vector<2x128xi1>, vector<2x128xf32>
    %155 = vector.extract_strided_slice %154 {offsets = [0, 0], sizes = [2, 32], strides = [1, 1]} : vector<2x128xf32> to vector<2x32xf32>
    %156 = vector.extract_strided_slice %154 {offsets = [0, 32], sizes = [2, 32], strides = [1, 1]} : vector<2x128xf32> to vector<2x32xf32>
    %157 = vector.extract_strided_slice %154 {offsets = [0, 64], sizes = [2, 32], strides = [1, 1]} : vector<2x128xf32> to vector<2x32xf32>
    %158 = vector.extract_strided_slice %154 {offsets = [0, 96], sizes = [2, 32], strides = [1, 1]} : vector<2x128xf32> to vector<2x32xf32>
    %159 = arith.mulf %156, %140 : vector<2x32xf32>
    %160 = arith.mulf %155, %157 : vector<2x32xf32>
    %161 = arith.addf %159, %160 : vector<2x32xf32>
    %162 = math.tanh %161 : vector<2x32xf32>
    %163 = arith.mulf %158, %162 : vector<2x32xf32>
    %164 = vector.extract_strided_slice %5 {offsets = [14, 0], sizes = [2, 128], strides = [1, 1]} : vector<16x128xf32> to vector<2x128xf32>
    %cst_41 = arith.constant dense<0.000000e+00> : vector<2x128xf32>
    %165 = tpu.matmul %163, %6, %cst_41 {dimension_numbers = #tpu.dot_dimension_numbers<[1], [0], [0], [1], [0, 0, 1, 1], [], []>} : vector<2x32xf32>, vector<32x128xf32>, vector<2x128xf32> -> vector<2x128xf32>
    %166 = arith.addf %164, %165 : vector<2x128xf32>
    %cst_42 = arith.constant 5.000000e-01 : f32
    %167 = vector.broadcast %cst_42 : f32 to vector<2x128xf32>
    %168 = arith.mulf %167, %166 : vector<2x128xf32>
    %169 = arith.select %12, %166, %168 : vector<2x128xi1>, vector<2x128xf32>
    %170 = math.tanh %169 : vector<2x128xf32>
    %cst_43 = arith.constant 5.000000e-01 : f32
    %171 = vector.broadcast %cst_43 : f32 to vector<2x128xf32>
    %172 = arith.mulf %171, %170 : vector<2x128xf32>
    %cst_44 = arith.constant 5.000000e-01 : f32
    %173 = vector.broadcast %cst_44 : f32 to vector<2x128xf32>
    %174 = arith.addf %172, %173 : vector<2x128xf32>
    %175 = arith.select %12, %170, %174 : vector<2x128xi1>, vector<2x128xf32>
    %176 = vector.extract_strided_slice %175 {offsets = [0, 0], sizes = [2, 32], strides = [1, 1]} : vector<2x128xf32> to vector<2x32xf32>
    %177 = vector.extract_strided_slice %175 {offsets = [0, 32], sizes = [2, 32], strides = [1, 1]} : vector<2x128xf32> to vector<2x32xf32>
    %178 = vector.extract_strided_slice %175 {offsets = [0, 64], sizes = [2, 32], strides = [1, 1]} : vector<2x128xf32> to vector<2x32xf32>
    %179 = vector.extract_strided_slice %175 {offsets = [0, 96], sizes = [2, 32], strides = [1, 1]} : vector<2x128xf32> to vector<2x32xf32>
    %180 = arith.mulf %177, %161 : vector<2x32xf32>
    %181 = arith.mulf %176, %178 : vector<2x32xf32>
    %182 = arith.addf %180, %181 : vector<2x32xf32>
    %183 = math.tanh %182 : vector<2x32xf32>
    %184 = arith.mulf %179, %183 : vector<2x32xf32>
    %c1 = arith.constant 1 : index
    %c0_45 = arith.constant 0 : index
    %c0_46 = arith.constant 0 : index
    %185 = vector.load %arg9[%c1, %c0_45, %c0_46] : memref<3x2x32xf32, #tpu.memory_space<vmem>>, vector<1x2x32xf32>
    %186 = vector.shape_cast %185 : vector<1x2x32xf32> to vector<2x32xf32>
    %187 = vector.shape_cast %184 : vector<2x32xf32> to vector<1x2x32xf32>
    tpu.vector_store %arg9[%c1, %c0_45, %c0_46], %187 {strides = array<i32>} : memref<3x2x32xf32, #tpu.memory_space<vmem>>, vector<1x2x32xf32>,
    %c2 = arith.constant 2 : index
    %c0_47 = arith.constant 0 : index
    %c0_48 = arith.constant 0 : index
    %188 = vector.load %arg9[%c2, %c0_47, %c0_48] : memref<3x2x32xf32, #tpu.memory_space<vmem>>, vector<1x2x32xf32>
    %189 = vector.shape_cast %188 : vector<1x2x32xf32> to vector<2x32xf32>
    %190 = vector.shape_cast %182 : vector<2x32xf32> to vector<1x2x32xf32>
    tpu.vector_store %arg9[%c2, %c0_47, %c0_48], %190 {strides = array<i32>} : memref<3x2x32xf32, #tpu.memory_space<vmem>>, vector<1x2x32xf32>,
    %191 = tpu.concatenate %37, %58, %79, %100, %121, %142, %163, %184 in 0 : vector<2x32xf32>, vector<2x32xf32>, vector<2x32xf32>, vector<2x32xf32>, vector<2x32xf32>, vector<2x32xf32>, vector<2x32xf32>, vector<2x32xf32> -> vector<16x32xf32>
    %c0_49 = arith.constant 0 : index
    %c0_50 = arith.constant 0 : index
    %192 = vector.load %arg6[%c0_49, %c0_50] : memref<32x32xf32, #tpu.memory_space<vmem>>, vector<32x32xf32>
    %cst_51 = arith.constant dense<0.000000e+00> : vector<16x32xf32>
    %193 = tpu.matmul %191, %192, %cst_51 {dimension_numbers = #tpu.dot_dimension_numbers<[1], [0], [0], [1], [0, 0, 1, 1], [], []>} : vector<16x32xf32>, vector<32x32xf32>, vector<16x32xf32> -> vector<16x32xf32>
    %c0_52 = arith.constant 0 : index
    %c0_53 = arith.constant 0 : index
    %194 = vector.load %arg7[%c0_52, %c0_53] : memref<1x32xf32, #tpu.memory_space<vmem>>, vector<1x32xf32>
    %195 = vector.broadcast %194 : vector<1x32xf32> to vector<16x32xf32>
    %196 = arith.addf %193, %195 : vector<16x32xf32>
    %197 = math.tanh %196 : vector<16x32xf32>
    %c0_54 = arith.constant 0 : index
    %c0_55 = arith.constant 0 : index
    %198 = vector.load %arg8[%c0_54, %c0_55] : memref<1x32xf32, #tpu.memory_space<vmem>>, vector<1x32xf32>
    %199 = vector.broadcast %198 : vector<1x32xf32> to vector<16x32xf32>
    %200 = arith.mulf %197, %199 : vector<16x32xf32>
    %cst_56 = arith.constant dense<0.000000e+00> : vector<16xf32>
    %201 = vector.multi_reduction <add>, %200, %cst_56 [1] : vector<16x32xf32> to vector<16xf32>
    %202 = vector.shape_cast %201 : vector<16xf32> to vector<16x1xf32>
    %203 = math.tanh %202 : vector<16x1xf32>
    %204 = math.exp %203 : vector<16x1xf32>
    %205 = tpu.iota {dimensions = array<i32: 0>} : vector<2x16xi32>
    %206 = tpu.iota {dimensions = array<i32: 1>} : vector<2x16xi32>
    %c1_i32 = arith.constant 1 : i32
    %207 = vector.broadcast %c1_i32 : i32 to vector<2x16xi32>
    %208 = arith.andi %206, %207 : vector<2x16xi32>
    %209 = arith.cmpi eq, %208, %205 : vector<2x16xi32>
    %210 = arith.extui %209 : vector<2x16xi1> to vector<2x16xi32>
    %211 = arith.sitofp %210 : vector<2x16xi32> to vector<2x16xf32>
    %212 = vector.broadcast %204 : vector<16x1xf32> to vector<16x32xf32>
    %213 = arith.mulf %212, %191 : vector<16x32xf32>
    %214 = tpu.concatenate %213, %204 in 1 : vector<16x32xf32>, vector<16x1xf32> -> vector<16x33xf32>
    %cst_57 = arith.constant dense<0.000000e+00> : vector<2x33xf32>
    %215 = tpu.matmul %211, %214, %cst_57 {dimension_numbers = #tpu.dot_dimension_numbers<[1], [0], [0], [1], [0, 0, 1, 1], [], []>} : vector<2x16xf32>, vector<16x33xf32>, vector<2x33xf32> -> vector<2x33xf32>
    %216 = vector.extract_strided_slice %215 {offsets = [0, 0], sizes = [2, 32], strides = [1, 1]} : vector<2x33xf32> to vector<2x32xf32>
    %217 = vector.extract_strided_slice %215 {offsets = [0, 32], sizes = [2, 1], strides = [1, 1]} : vector<2x33xf32> to vector<2x1xf32>
    %218 = vector.broadcast %217 : vector<2x1xf32> to vector<2x32xf32>
    %219 = arith.divf %216, %218 : vector<2x32xf32>
    %c0_58 = arith.constant 0 : index
    %c0_59 = arith.constant 0 : index
    %c0_60 = arith.constant 0 : index
    %220 = vector.load %arg9[%c0_58, %c0_59, %c0_60] : memref<3x2x32xf32, #tpu.memory_space<vmem>>, vector<1x2x32xf32>
    %221 = vector.shape_cast %220 : vector<1x2x32xf32> to vector<2x32xf32>
    %222 = vector.shape_cast %219 : vector<2x32xf32> to vector<1x2x32xf32>
    tpu.vector_store %arg9[%c0_58, %c0_59, %c0_60], %222 {strides = array<i32>} : memref<3x2x32xf32, #tpu.memory_space<vmem>>, vector<1x2x32xf32>,
    return
  }
}

</mosaic_0001>

<llo_original>
// kernel: tpu_custom_call.1
$region0: #{tpu_custom_call.1}
  #allocation0 [shape = 'u32[]', space=smem, size = 0x4, offset = 0x4, fixed_abs, tag = 'smem constant byte address 0x4 - core index']
  #allocation1 [shape = 'u32[144,128]{1,0:T(1,128)}', space=vmem, size = 0x12000, scoped, tag = 'internal scratch']
  %s0 = inlined_call_operand.hbm [shape: f32[16,16], index: 0, kind: input, shape index: {}]
  %s1 = inlined_call_operand.vmem [shape: f32[1,2,32], index: 1, kind: input, shape index: {}]
  %s2 = inlined_call_operand.vmem [shape: f32[1,2,32], index: 2, kind: input, shape index: {}]
  %s3 = inlined_call_operand.hbm [shape: f32[16,128], index: 3, kind: input, shape index: {}]
  %s4 = inlined_call_operand.hbm [shape: f32[32,128], index: 4, kind: input, shape index: {}]
  %s5 = inlined_call_operand.vmem [shape: f32[1,128], index: 5, kind: input, shape index: {}]
  %s6 = inlined_call_operand.hbm [shape: f32[32,32], index: 6, kind: input, shape index: {}]
  %s7 = inlined_call_operand.vmem [shape: f32[1,32], index: 7, kind: input, shape index: {}]
  %s8 = inlined_call_operand.vmem [shape: f32[1,32], index: 8, kind: input, shape index: {}]
  %s9 = inlined_call_operand.hbm [shape: f32[3,2,32], index: 9, kind: output, shape index: {}]
  %s10 = sld [smem:[#allocation0]]
  $region62: #{tpu_custom_call.1} parent=0
    _
  %s12 = ssub.s32 1, %s10
  %s13 = scalar_select 0, %s12, %s10
  $region1: #{tpu_custom_call.1} parent=0
    #allocation2 [shape = 'u8[8192]{0}', space=vmem, size = 0x2000, scoped, tag = 'input window, operand 0, single buffered']
    #allocation3 [shape = 's32[1]{0}', space=sflag, size = 0x4, scoped, tag = 'scoped memory for tpu_custom_call.1']
    #allocation4 [shape = 's32[1]{0}', space=sflag, size = 0x4, scoped, tag = 'scoped memory for tpu_custom_call.1']
    #allocation5 [shape = 'u8[8192]{0}', space=vmem, size = 0x2000, scoped, tag = 'input window, operand 3, single buffered']
    #allocation6 [shape = 's32[1]{0}', space=sflag, size = 0x4, scoped, tag = 'scoped memory for tpu_custom_call.1']
    #allocation7 [shape = 'u8[16384]{0}', space=vmem, size = 0x4000, scoped, tag = 'input window, operand 4, single buffered']
    #allocation8 [shape = 'u8[16384]{0}', space=vmem, size = 0x4000, scoped, tag = 'input window, operand 6, single buffered']
    #allocation9 [shape = 's32[1]{0}', space=sflag, size = 0x4, scoped, tag = 'scoped memory for tpu_custom_call.1']
    #allocation10 [shape = 'u8[3072]{0}', space=vmem, size = 0xc00, scoped, tag = 'output window, operand 0, single buffered']
    %14 = vsyncpa [#allocation3], 0
    %15 = vsyncpa [#allocation6], 0
    %16 = vsyncpa [#allocation9], 0
    %17 = vsyncpa [#allocation4], 0
    // Predicated region
    $region2: #{tpu_custom_call.1} parent=1 // pred_check
      _
    $region3: #{tpu_custom_call.1} parent=1 // pred_check_branch
      %19 = sbr.rel (0) target = $region5
    $region4: #{tpu_custom_call.1} parent=1 // pred_region
      %s21 = ssub.s32 256, 256
      %22 = vsyncadd [#allocation3], %s21
      %s23 = sshll.u32 [#allocation2], 4
      %s24 = int_to_ptr.vmem [resolvable:$true] %s23
      %29 = dma.hbm_to_vmem [thread:$0]  %s0, 256, %s24, [#allocation3], 128, 128, 8
    $region5: #{tpu_custom_call.1} parent=1 // pred_fallthru
      _
    // Predicated region
    $region6: #{tpu_custom_call.1} parent=1 // pred_check
      _
    $region7: #{tpu_custom_call.1} parent=1 // pred_check_branch
      %31 = sbr.rel (0) target = $region9
    $region8: #{tpu_custom_call.1} parent=1 // pred_region
      _
    $region9: #{tpu_custom_call.1} parent=1 // pred_fallthru
      _
    // Predicated region
    $region10: #{tpu_custom_call.1} parent=1 // pred_check
      _
    $region11: #{tpu_custom_call.1} parent=1 // pred_check_branch
      %33 = sbr.rel (0) target = $region13
    $region12: #{tpu_custom_call.1} parent=1 // pred_region
      _
    $region13: #{tpu_custom_call.1} parent=1 // pred_fallthru
      _
    // Predicated region
    $region14: #{tpu_custom_call.1} parent=1 // pred_check
      _
    $region15: #{tpu_custom_call.1} parent=1 // pred_check_branch
      %35 = sbr.rel (0) target = $region17
    $region16: #{tpu_custom_call.1} parent=1 // pred_region
      %s37 = ssub.s32 256, 256
      %38 = vsyncadd [#allocation6], %s37
      %s39 = sshll.u32 [#allocation5], 4
      %s40 = int_to_ptr.vmem [resolvable:$true] %s39
      %45 = dma.hbm_to_vmem [thread:$0]  %s3, 256, %s40, [#allocation6], 128, 128, 8
    $region17: #{tpu_custom_call.1} parent=1 // pred_fallthru
      _
    // Predicated region
    $region18: #{tpu_custom_call.1} parent=1 // pred_check
      _
    $region19: #{tpu_custom_call.1} parent=1 // pred_check_branch
      %47 = sbr.rel (0) target = $region21
    $region20: #{tpu_custom_call.1} parent=1 // pred_region
      %s49 = ssub.s32 512, 512
      %50 = vsyncadd [#allocation6], %s49
      %s51 = sshll.u32 [#allocation7], 4
      %s52 = int_to_ptr.vmem [resolvable:$true] %s51
      %57 = dma.hbm_to_vmem [thread:$0]  %s4, 512, %s52, [#allocation6], 128, 128, 8
    $region21: #{tpu_custom_call.1} parent=1 // pred_fallthru
      _
    // Predicated region
    $region22: #{tpu_custom_call.1} parent=1 // pred_check
      _
    $region23: #{tpu_custom_call.1} parent=1 // pred_check_branch
      %59 = sbr.rel (0) target = $region25
    $region24: #{tpu_custom_call.1} parent=1 // pred_region
      _
    $region25: #{tpu_custom_call.1} parent=1 // pred_fallthru
      _
    // Predicated region
    $region26: #{tpu_custom_call.1} parent=1 // pred_check
      _
    $region27: #{tpu_custom_call.1} parent=1 // pred_check_branch
      %61 = sbr.rel (0) target = $region29
    $region28: #{tpu_custom_call.1} parent=1 // pred_region
      %s63 = ssub.s32 512, 512
      %64 = vsyncadd [#allocation9], %s63
      %s65 = sshll.u32 [#allocation8], 4
      %s66 = int_to_ptr.vmem [resolvable:$true] %s65
      %71 = dma.hbm_to_vmem [thread:$0]  %s6, 512, %s66, [#allocation9], 128, 128, 8
    $region29: #{tpu_custom_call.1} parent=1 // pred_fallthru
      _
    // Predicated region
    $region30: #{tpu_custom_call.1} parent=1 // pred_check
      _
    $region31: #{tpu_custom_call.1} parent=1 // pred_check_branch
      %73 = sbr.rel (0) target = $region33
    $region32: #{tpu_custom_call.1} parent=1 // pred_region
      _
    $region33: #{tpu_custom_call.1} parent=1 // pred_fallthru
      _
    // Predicated region
    $region34: #{tpu_custom_call.1} parent=1 // pred_check
      _
    $region35: #{tpu_custom_call.1} parent=1 // pred_check_branch
      %75 = sbr.rel (0) target = $region37
    $region36: #{tpu_custom_call.1} parent=1 // pred_region
      _
    $region37: #{tpu_custom_call.1} parent=1 // pred_fallthru
      _
    // Predicated region
    $region38: #{tpu_custom_call.1} parent=1 // pred_check
      _
    $region39: #{tpu_custom_call.1} parent=1 // pred_check_branch
      %77 = sbr.rel (0) target = $region41
    $region40: #{tpu_custom_call.1} parent=1 // pred_region
      %78 = dma.done [#allocation3], 256
    $region41: #{tpu_custom_call.1} parent=1 // pred_fallthru
      _
    // Predicated region
    $region42: #{tpu_custom_call.1} parent=1 // pred_check
      _
    $region43: #{tpu_custom_call.1} parent=1 // pred_check_branch
      %80 = sbr.rel (0) target = $region45
    $region44: #{tpu_custom_call.1} parent=1 // pred_region
      %81 = dma.done [#allocation6], 256
    $region45: #{tpu_custom_call.1} parent=1 // pred_fallthru
      _
    // Predicated region
    $region46: #{tpu_custom_call.1} parent=1 // pred_check
      _
    $region47: #{tpu_custom_call.1} parent=1 // pred_check_branch
      %83 = sbr.rel (0) target = $region49
    $region48: #{tpu_custom_call.1} parent=1 // pred_region
      %84 = dma.done [#allocation6], 512
    $region49: #{tpu_custom_call.1} parent=1 // pred_fallthru
      _
    // Predicated region
    $region50: #{tpu_custom_call.1} parent=1 // pred_check
      _
    $region51: #{tpu_custom_call.1} parent=1 // pred_check_branch
      %86 = sbr.rel (0) target = $region53
    $region52: #{tpu_custom_call.1} parent=1 // pred_region
      %87 = dma.done [#allocation9], 512
    $region53: #{tpu_custom_call.1} parent=1 // pred_fallthru
      _
    %v88 = vld [vmem:[#allocation2] sm:$0xff]
    %v89 = vld [vmem:[#allocation2 + $0x8] sm:$0xff]
    %v90 = vld [vmem:[#allocation5] sm:$0xff]
    %v91 = vld [vmem:[#allocation5 + $0x8] sm:$0xff]
    %v92 = vld [vmem:[%s5] sm:$0x1]
    %v94 = vlaneseq
    %v95 = vshrl.u32 %v94, 7
    %v96 = vsub.s32 0, %v95
    %v97 = vrot.slane %v92, %v96
    %vm99 = vcmask 130048
    %v101 = vsel %vm99, %v88, 0
    %v104 = vsel %vm99, %v89, 0
    %106 = vmatprep.subr.mxu0 0.0
    %107 = vmatpush1.msra.mxu0 %v90
    %108 = vmatprep.subr.mxu0 0.0
    %109 = vmatpush1.msra.mxu0 %v91
    %110 = vmatprep.subr.mxu0 0.0
    %111 = vmatpush1.msra.mxu0 0.0
    %112 = vmatprep.subr.mxu0 0.0
    %113 = vmatpush1.msra.mxu0 0.0
    %114 = vmatprep.subr.mxu0 0.0
    %115 = vmatpush1.msra.mxu0 0.0
    %116 = vmatprep.subr.mxu0 0.0
    %117 = vmatpush1.msra.mxu0 0.0
    %118 = vmatprep.subr.mxu0 0.0
    %119 = vmatpush1.msra.mxu0 0.0
    %120 = vmatprep.subr.mxu0 0.0
    %121 = vmatpush1.msra.mxu0 0.0
    %122 = vmatprep.subr.mxu0 0.0
    %123 = vmatpush1.msra.mxu0 0.0
    %124 = vmatprep.subr.mxu0 0.0
    %125 = vmatpush1.msra.mxu0 0.0
    %126 = vmatprep.subr.mxu0 0.0
    %127 = vmatpush1.msra.mxu0 0.0
    %128 = vmatprep.subr.mxu0 0.0
    %129 = vmatpush1.msra.mxu0 0.0
    %130 = vmatprep.subr.mxu0 0.0
    %131 = vmatpush1.msra.mxu0 0.0
    %132 = vmatprep.subr.mxu0 0.0
    %133 = vmatpush1.msra.mxu0 0.0
    %134 = vmatprep.subr.mxu0 0.0
    %135 = vmatpush1.msra.mxu0 0.0
    %136 = vmatprep.subr.mxu0 0.0
    %137 = vmatpush1.msra.mxu0 0.0
    %138 = vmatprep.subr.mxu0 0.0
    %139 = vmatpush1.msra.mxu0 0.0
    %140 = vmatprep.subr.mxu0 0.0
    %141 = vmatpush1.msra.mxu0 0.0
    %142 = vmatprep.subr.mxu0 0.0
    %143 = vmatpush1.msra.mxu0 0.0
    %144 = vmatprep.subr.mxu0 0.0
    %145 = vmatpush1.msra.mxu0 0.0
    %146 = vmatprep.subr.mxu0 0.0
    %147 = vmatpush1.msra.mxu0 0.0
    %148 = vmatprep.subr.mxu0 0.0
    %149 = vmatpush1.msra.mxu0 0.0
    %150 = vmatprep.subr.mxu0 0.0
    %151 = vmatpush1.msra.mxu0 0.0
    %152 = vmatprep.subr.mxu0 0.0
    %153 = vmatpush1.msra.mxu0 0.0
    %154 = vmatprep.subr.mxu0 0.0
    %155 = vmatpush1.msra.mxu0 0.0
    %156 = vmatprep.subr.mxu0 0.0
    %157 = vmatpush1.msra.mxu0 0.0
    %158 = vmatprep.subr.mxu0 0.0
    %159 = vmatpush1.msra.mxu0 0.0
    %160 = vmatprep.subr.mxu0 0.0
    %161 = vmatpush1.msra.mxu0 0.0
    %162 = vmatprep.subr.mxu0 0.0
    %163 = vmatpush1.msra.mxu0 0.0
    %164 = vmatprep.subr.mxu0 0.0
    %165 = vmatpush1.msra.mxu0 0.0
    %166 = vmatprep.subr.mxu0 0.0
    %167 = vmatpush1.msra.mxu0 0.0
    %168 = vmatprep.subr.mxu0 0.0
    %169 = vmatpush1.msra.mxu0 0.0
    %170 = vmatprep.mubr.f32.mxu0 0.0
    %171 = vmatmul.mubr.f32.gmra.mrb[0].mxu0 %v101
    %v172 = vpop.f32.mrb[0].mxu0
    %v173 = vadd.f32 %v97, %v172
    %v174 = vpop.f32.mrb[0].mxu0
    %175 = vmatprep.mubr.f32.mxu0 0.0
    %176 = vmatmul.mubr.f32.gmra.mrb[0].mxu0 %v104
    %v177 = vpop.f32.mrb[0].mxu0
    %v178 = vadd.f32 %v97, %v177
    %v179 = vpop.f32.mrb[0].mxu0
    %180 = vdwg.mxu0
    %v181 = vld [vmem:[#allocation7] sm:$0xff]
    %v182 = vld [vmem:[#allocation7 + $0x8] sm:$0xff]
    %v183 = vld [vmem:[#allocation7 + $0x10] sm:$0xff]
    %v184 = vld [vmem:[#allocation7 + $0x18] sm:$0xff]
    %v185 = vlaneseq
    %v186 = vand.u32 %v185, 127
    %vm187 = vcmp.ge.s32.totalorder %v186, 64
    %vm188 = vcmp.lt.s32.totalorder %v186, 96
    %vm189 = vmand %vm187, %vm188
    %v190 = vld [vmem:[%s1] sm:$0x3]
    %v191 = vld [vmem:[%s2] sm:$0x3]
    %vm192 = vcmask 261120
    %v194 = vsel %vm192, %v190, 0
    %196 = vmatprep.subr.mxu0 0.0
    %197 = vmatpush1.msra.mxu0 %v181
    %198 = vmatprep.subr.mxu0 0.0
    %199 = vmatpush1.msra.mxu0 %v182
    %200 = vmatprep.subr.mxu0 0.0
    %201 = vmatpush1.msra.mxu0 %v183
    %202 = vmatprep.subr.mxu0 0.0
    %203 = vmatpush1.msra.mxu0 %v184
    %204 = vmatprep.subr.mxu0 0.0
    %205 = vmatpush1.msra.mxu0 0.0
    %206 = vmatprep.subr.mxu0 0.0
    %207 = vmatpush1.msra.mxu0 0.0
    %208 = vmatprep.subr.mxu0 0.0
    %209 = vmatpush1.msra.mxu0 0.0
    %210 = vmatprep.subr.mxu0 0.0
    %211 = vmatpush1.msra.mxu0 0.0
    %212 = vmatprep.subr.mxu0 0.0
    %213 = vmatpush1.msra.mxu0 0.0
    %214 = vmatprep.subr.mxu0 0.0
    %215 = vmatpush1.msra.mxu0 0.0
    %216 = vmatprep.subr.mxu0 0.0
    %217 = vmatpush1.msra.mxu0 0.0
    %218 = vmatprep.subr.mxu0 0.0
    %219 = vmatpush1.msra.mxu0 0.0
    %220 = vmatprep.subr.mxu0 0.0
    %221 = vmatpush1.msra.mxu0 0.0
    %222 = vmatprep.subr.mxu0 0.0
    %223 = vmatpush1.msra.mxu0 0.0
    %224 = vmatprep.subr.mxu0 0.0
    %225 = vmatpush1.msra.mxu0 0.0
    %226 = vmatprep.subr.mxu0 0.0
    %227 = vmatpush1.msra.mxu0 0.0
    %228 = vmatprep.subr.mxu0 0.0
    %229 = vmatpush1.msra.mxu0 0.0
    %230 = vmatprep.subr.mxu0 0.0
    %231 = vmatpush1.msra.mxu0 0.0
    %232 = vmatprep.subr.mxu0 0.0
    %233 = vmatpush1.msra.mxu0 0.0
    %234 = vmatprep.subr.mxu0 0.0
    %235 = vmatpush1.msra.mxu0 0.0
    %236 = vmatprep.subr.mxu0 0.0
    %237 = vmatpush1.msra.mxu0 0.0
    %238 = vmatprep.subr.mxu0 0.0
    %239 = vmatpush1.msra.mxu0 0.0
    %240 = vmatprep.subr.mxu0 0.0
    %241 = vmatpush1.msra.mxu0 0.0
    %242 = vmatprep.subr.mxu0 0.0
    %243 = vmatpush1.msra.mxu0 0.0
    %244 = vmatprep.subr.mxu0 0.0
    %245 = vmatpush1.msra.mxu0 0.0
    %246 = vmatprep.subr.mxu0 0.0
    %247 = vmatpush1.msra.mxu0 0.0
    %248 = vmatprep.subr.mxu0 0.0
    %249 = vmatpush1.msra.mxu0 0.0
    %250 = vmatprep.subr.mxu0 0.0
    %251 = vmatpush1.msra.mxu0 0.0
    %252 = vmatprep.subr.mxu0 0.0
    %253 = vmatpush1.msra.mxu0 0.0
    %254 = vmatprep.subr.mxu0 0.0
    %255 = vmatpush1.msra.mxu0 0.0
    %256 = vmatprep.subr.mxu0 0.0
    %257 = vmatpush1.msra.mxu0 0.0
    %258 = vmatprep.subr.mxu0 0.0
    %259 = vmatpush1.msra.mxu0 0.0
    %260 = vmatprep.mubr.f32.mxu0 0.0
    %261 = vmatmul.mubr.f32.gmra.mrb[0].mxu0 %v194
    %v262 = vpop.f32.mrb[0].mxu0
    %v263 = vadd.f32 0.0, %v262
    %v264 = vpop.f32.mrb[0].mxu0
    %265 = vdwg.mxu0
    %v266 = vadd.f32 %v173, %v263
    %v267 = vmul.f32 %v266, 0.5
    %v268 = vsel %vm189, %v266, %v267
    %v269 = vtanh.pop %v268
    %v270 = vmul.f32 %v269, 0.5
    %v271 = vadd.f32 %v270, 0.5
    %v272 = vsel %vm189, %v269, %v271
    %274 = vrot.lane.b32.xlu0 %v191, 32
    %v275 = vpop.permute.xlu0 %274
    %v277 = vmul.f32 %v272, %v275
    %279 = vrot.lane.b32.xlu0 %v272, 64
    %v280 = vpop.permute.xlu0 %279
    %v282 = vmul.f32 %v272, %v280
    %284 = vrot.lane.b32.xlu0 %v282, 32
    %v285 = vpop.permute.xlu0 %284
    %v287 = vadd.f32 %v277, %v285
    %v288 = vtanh.pop %v287
    %290 = vrot.lane.b32.xlu0 %v288, 64
    %v291 = vpop.permute.xlu0 %290
    %v293 = vmul.f32 %v272, %v291
    %295 = vrot.lane.b32.xlu0 %v293, 32
    %v296 = vpop.permute.xlu0 %295
    %v297 = vsel %vm192, %v296, 0
    %299 = vmatprep.subr.mxu0 0.0
    %300 = vmatpush1.msra.mxu0 %v181
    %301 = vmatprep.subr.mxu0 0.0
    %302 = vmatpush1.msra.mxu0 %v182
    %303 = vmatprep.subr.mxu0 0.0
    %304 = vmatpush1.msra.mxu0 %v183
    %305 = vmatprep.subr.mxu0 0.0
    %306 = vmatpush1.msra.mxu0 %v184
    %307 = vmatprep.subr.mxu0 0.0
    %308 = vmatpush1.msra.mxu0 0.0
    %309 = vmatprep.subr.mxu0 0.0
    %310 = vmatpush1.msra.mxu0 0.0
    %311 = vmatprep.subr.mxu0 0.0
    %312 = vmatpush1.msra.mxu0 0.0
    %313 = vmatprep.subr.mxu0 0.0
    %314 = vmatpush1.msra.mxu0 0.0
    %315 = vmatprep.subr.mxu0 0.0
    %316 = vmatpush1.msra.mxu0 0.0
    %317 = vmatprep.subr.mxu0 0.0
    %318 = vmatpush1.msra.mxu0 0.0
    %319 = vmatprep.subr.mxu0 0.0
    %320 = vmatpush1.msra.mxu0 0.0
    %321 = vmatprep.subr.mxu0 0.0
    %322 = vmatpush1.msra.mxu0 0.0
    %323 = vmatprep.subr.mxu0 0.0
    %324 = vmatpush1.msra.mxu0 0.0
    %325 = vmatprep.subr.mxu0 0.0
    %326 = vmatpush1.msra.mxu0 0.0
    %327 = vmatprep.subr.mxu0 0.0
    %328 = vmatpush1.msra.mxu0 0.0
    %329 = vmatprep.subr.mxu0 0.0
    %330 = vmatpush1.msra.mxu0 0.0
    %331 = vmatprep.subr.mxu0 0.0
    %332 = vmatpush1.msra.mxu0 0.0
    %333 = vmatprep.subr.mxu0 0.0
    %334 = vmatpush1.msra.mxu0 0.0
    %335 = vmatprep.subr.mxu0 0.0
    %336 = vmatpush1.msra.mxu0 0.0
    %337 = vmatprep.subr.mxu0 0.0
    %338 = vmatpush1.msra.mxu0 0.0
    %339 = vmatprep.subr.mxu0 0.0
    %340 = vmatpush1.msra.mxu0 0.0
    %341 = vmatprep.subr.mxu0 0.0
    %342 = vmatpush1.msra.mxu0 0.0
    %343 = vmatprep.subr.mxu0 0.0
    %344 = vmatpush1.msra.mxu0 0.0
    %345 = vmatprep.subr.mxu0 0.0
    %346 = vmatpush1.msra.mxu0 0.0
    %347 = vmatprep.subr.mxu0 0.0
    %348 = vmatpush1.msra.mxu0 0.0
    %349 = vmatprep.subr.mxu0 0.0
    %350 = vmatpush1.msra.mxu0 0.0
    %351 = vmatprep.subr.mxu0 0.0
    %352 = vmatpush1.msra.mxu0 0.0
    %353 = vmatprep.subr.mxu0 0.0
    %354 = vmatpush1.msra.mxu0 0.0
    %355 = vmatprep.subr.mxu0 0.0
    %356 = vmatpush1.msra.mxu0 0.0
    %357 = vmatprep.subr.mxu0 0.0
    %358 = vmatpush1.msra.mxu0 0.0
    %359 = vmatprep.subr.mxu0 0.0
    %360 = vmatpush1.msra.mxu0 0.0
    %361 = vmatprep.subr.mxu0 0.0
    %362 = vmatpush1.msra.mxu0 0.0
    %363 = vmatprep.mubr.f32.mxu0 0.0
    %364 = vmatmul.mubr.f32.gmra.mrb[0].mxu0 %v297
    %v365 = vpop.f32.mrb[0].mxu0
    %v366 = vadd.f32 0.0, %v365
    %v367 = vpop.f32.mrb[0].mxu0
    %368 = vdwg.mxu0
    %v370 = vrot.slane %v366, 6
    %v372 = vadd.f32 %v173, %v370
    %v373 = vmul.f32 %v372, 0.5
    %v374 = vsel %vm189, %v372, %v373
    %v375 = vtanh.pop %v374
    %v376 = vmul.f32 %v375, 0.5
    %v377 = vadd.f32 %v376, 0.5
    %v378 = vsel %vm189, %v375, %v377
    %v380 = vrot.slane %v287, 6
    %v382 = vmul.f32 %v378, %v380
    %384 = vrot.lane.b32.xlu0 %v378, 64
    %v385 = vpop.permute.xlu0 %384
    %v387 = vmul.f32 %v378, %v385
    %389 = vrot.lane.b32.xlu0 %v387, 32
    %v390 = vpop.permute.xlu0 %389
    %v392 = vadd.f32 %v382, %v390
    %v393 = vtanh.pop %v392
    %395 = vrot.lane.b32.xlu0 %v393, 64
    %v396 = vpop.permute.xlu0 %395
    %v398 = vmul.f32 %v378, %v396
    %v400 = vrot.slane %v398, 2
    %401 = vrot.lane.b32.xlu0 %v400, 32
    %v402 = vpop.permute.xlu0 %401
    %v403 = vsel %vm192, %v402, 0
    %405 = vmatprep.subr.mxu0 0.0
    %406 = vmatpush1.msra.mxu0 %v181
    %407 = vmatprep.subr.mxu0 0.0
    %408 = vmatpush1.msra.mxu0 %v182
    %409 = vmatprep.subr.mxu0 0.0
    %410 = vmatpush1.msra.mxu0 %v183
    %411 = vmatprep.subr.mxu0 0.0
    %412 = vmatpush1.msra.mxu0 %v184
    %413 = vmatprep.subr.mxu0 0.0
    %414 = vmatpush1.msra.mxu0 0.0
    %415 = vmatprep.subr.mxu0 0.0
    %416 = vmatpush1.msra.mxu0 0.0
    %417 = vmatprep.subr.mxu0 0.0
    %418 = vmatpush1.msra.mxu0 0.0
    %419 = vmatprep.subr.mxu0 0.0
    %420 = vmatpush1.msra.mxu0 0.0
    %421 = vmatprep.subr.mxu0 0.0
    %422 = vmatpush1.msra.mxu0 0.0
    %423 = vmatprep.subr.mxu0 0.0
    %424 = vmatpush1.msra.mxu0 0.0
    %425 = vmatprep.subr.mxu0 0.0
    %426 = vmatpush1.msra.mxu0 0.0
    %427 = vmatprep.subr.mxu0 0.0
    %428 = vmatpush1.msra.mxu0 0.0
    %429 = vmatprep.subr.mxu0 0.0
    %430 = vmatpush1.msra.mxu0 0.0
    %431 = vmatprep.subr.mxu0 0.0
    %432 = vmatpush1.msra.mxu0 0.0
    %433 = vmatprep.subr.mxu0 0.0
    %434 = vmatpush1.msra.mxu0 0.0
    %435 = vmatprep.subr.mxu0 0.0
    %436 = vmatpush1.msra.mxu0 0.0
    %437 = vmatprep.subr.mxu0 0.0
    %438 = vmatpush1.msra.mxu0 0.0
    %439 = vmatprep.subr.mxu0 0.0
    %440 = vmatpush1.msra.mxu0 0.0
    %441 = vmatprep.subr.mxu0 0.0
    %442 = vmatpush1.msra.mxu0 0.0
    %443 = vmatprep.subr.mxu0 0.0
    %444 = vmatpush1.msra.mxu0 0.0
    %445 = vmatprep.subr.mxu0 0.0
    %446 = vmatpush1.msra.mxu0 0.0
    %447 = vmatprep.subr.mxu0 0.0
    %448 = vmatpush1.msra.mxu0 0.0
    %449 = vmatprep.subr.mxu0 0.0
    %450 = vmatpush1.msra.mxu0 0.0
    %451 = vmatprep.subr.mxu0 0.0
    %452 = vmatpush1.msra.mxu0 0.0
    %453 = vmatprep.subr.mxu0 0.0
    %454 = vmatpush1.msra.mxu0 0.0
    %455 = vmatprep.subr.mxu0 0.0
    %456 = vmatpush1.msra.mxu0 0.0
    %457 = vmatprep.subr.mxu0 0.0
    %458 = vmatpush1.msra.mxu0 0.0
    %459 = vmatprep.subr.mxu0 0.0
    %460 = vmatpush1.msra.mxu0 0.0
    %461 = vmatprep.subr.mxu0 0.0
    %462 = vmatpush1.msra.mxu0 0.0
    %463 = vmatprep.subr.mxu0 0.0
    %464 = vmatpush1.msra.mxu0 0.0
    %465 = vmatprep.subr.mxu0 0.0
    %466 = vmatpush1.msra.mxu0 0.0
    %467 = vmatprep.subr.mxu0 0.0
    %468 = vmatpush1.msra.mxu0 0.0
    %469 = vmatprep.mubr.f32.mxu0 0.0
    %470 = vmatmul.mubr.f32.gmra.mrb[0].mxu0 %v403
    %v471 = vpop.f32.mrb[0].mxu0
    %v472 = vadd.f32 0.0, %v471
    %v473 = vpop.f32.mrb[0].mxu0
    %474 = vdwg.mxu0
    %v476 = vrot.slane %v472, 4
    %v478 = vadd.f32 %v173, %v476
    %v479 = vmul.f32 %v478, 0.5
    %v480 = vsel %vm189, %v478, %v479
    %v481 = vtanh.pop %v480
    %v482 = vmul.f32 %v481, 0.5
    %v483 = vadd.f32 %v482, 0.5
    %v484 = vsel %vm189, %v481, %v483
    %v486 = vrot.slane %v392, 6
    %v488 = vmul.f32 %v484, %v486
    %490 = vrot.lane.b32.xlu0 %v484, 64
    %v491 = vpop.permute.xlu0 %490
    %v493 = vmul.f32 %v484, %v491
    %495 = vrot.lane.b32.xlu0 %v493, 32
    %v496 = vpop.permute.xlu0 %495
    %v498 = vadd.f32 %v488, %v496
    %v499 = vtanh.pop %v498
    %501 = vrot.lane.b32.xlu0 %v499, 64
    %v502 = vpop.permute.xlu0 %501
    %v504 = vmul.f32 %v484, %v502
    %v506 = vrot.slane %v504, 4
    %507 = vrot.lane.b32.xlu0 %v506, 32
    %v508 = vpop.permute.xlu0 %507
    %v509 = vsel %vm192, %v508, 0
    %511 = vmatprep.subr.mxu0 0.0
    %512 = vmatpush1.msra.mxu0 %v181
    %513 = vmatprep.subr.mxu0 0.0
    %514 = vmatpush1.msra.mxu0 %v182
    %515 = vmatprep.subr.mxu0 0.0
    %516 = vmatpush1.msra.mxu0 %v183
    %517 = vmatprep.subr.mxu0 0.0
    %518 = vmatpush1.msra.mxu0 %v184
    %519 = vmatprep.subr.mxu0 0.0
    %520 = vmatpush1.msra.mxu0 0.0
    %521 = vmatprep.subr.mxu0 0.0
    %522 = vmatpush1.msra.mxu0 0.0
    %523 = vmatprep.subr.mxu0 0.0
    %524 = vmatpush1.msra.mxu0 0.0
    %525 = vmatprep.subr.mxu0 0.0
    %526 = vmatpush1.msra.mxu0 0.0
    %527 = vmatprep.subr.mxu0 0.0
    %528 = vmatpush1.msra.mxu0 0.0
    %529 = vmatprep.subr.mxu0 0.0
    %530 = vmatpush1.msra.mxu0 0.0
    %531 = vmatprep.subr.mxu0 0.0
    %532 = vmatpush1.msra.mxu0 0.0
    %533 = vmatprep.subr.mxu0 0.0
    %534 = vmatpush1.msra.mxu0 0.0
    %535 = vmatprep.subr.mxu0 0.0
    %536 = vmatpush1.msra.mxu0 0.0
    %537 = vmatprep.subr.mxu0 0.0
    %538 = vmatpush1.msra.mxu0 0.0
    %539 = vmatprep.subr.mxu0 0.0
    %540 = vmatpush1.msra.mxu0 0.0
    %541 = vmatprep.subr.mxu0 0.0
    %542 = vmatpush1.msra.mxu0 0.0
    %543 = vmatprep.subr.mxu0 0.0
    %544 = vmatpush1.msra.mxu0 0.0
    %545 = vmatprep.subr.mxu0 0.0
    %546 = vmatpush1.msra.mxu0 0.0
    %547 = vmatprep.subr.mxu0 0.0
    %548 = vmatpush1.msra.mxu0 0.0
    %549 = vmatprep.subr.mxu0 0.0
    %550 = vmatpush1.msra.mxu0 0.0
    %551 = vmatprep.subr.mxu0 0.0
    %552 = vmatpush1.msra.mxu0 0.0
    %553 = vmatprep.subr.mxu0 0.0
    %554 = vmatpush1.msra.mxu0 0.0
    %555 = vmatprep.subr.mxu0 0.0
    %556 = vmatpush1.msra.mxu0 0.0
    %557 = vmatprep.subr.mxu0 0.0
    %558 = vmatpush1.msra.mxu0 0.0
    %559 = vmatprep.subr.mxu0 0.0
    %560 = vmatpush1.msra.mxu0 0.0
    %561 = vmatprep.subr.mxu0 0.0
    %562 = vmatpush1.msra.mxu0 0.0
    %563 = vmatprep.subr.mxu0 0.0
    %564 = vmatpush1.msra.mxu0 0.0
    %565 = vmatprep.subr.mxu0 0.0
    %566 = vmatpush1.msra.mxu0 0.0
    %567 = vmatprep.subr.mxu0 0.0
    %568 = vmatpush1.msra.mxu0 0.0
    %569 = vmatprep.subr.mxu0 0.0
    %570 = vmatpush1.msra.mxu0 0.0
    %571 = vmatprep.subr.mxu0 0.0
    %572 = vmatpush1.msra.mxu0 0.0
    %573 = vmatprep.subr.mxu0 0.0
    %574 = vmatpush1.msra.mxu0 0.0
    %575 = vmatprep.mubr.f32.mxu0 0.0
    %576 = vmatmul.mubr.f32.gmra.mrb[0].mxu0 %v509
    %v577 = vpop.f32.mrb[0].mxu0
    %v578 = vadd.f32 0.0, %v577
    %v579 = vpop.f32.mrb[0].mxu0
    %580 = vdwg.mxu0
    %v582 = vrot.slane %v578, 2
    %v584 = vadd.f32 %v173, %v582
    %v585 = vmul.f32 %v584, 0.5
    %v586 = vsel %vm189, %v584, %v585
    %v587 = vtanh.pop %v586
    %v588 = vmul.f32 %v587, 0.5
    %v589 = vadd.f32 %v588, 0.5
    %v590 = vsel %vm189, %v587, %v589
    %v592 = vrot.slane %v498, 6
    %v594 = vmul.f32 %v590, %v592
    %596 = vrot.lane.b32.xlu0 %v590, 64
    %v597 = vpop.permute.xlu0 %596
    %v599 = vmul.f32 %v590, %v597
    %601 = vrot.lane.b32.xlu0 %v599, 32
    %v602 = vpop.permute.xlu0 %601
    %v604 = vadd.f32 %v594, %v602
    %v605 = vtanh.pop %v604
    %607 = vrot.lane.b32.xlu0 %v605, 64
    %v608 = vpop.permute.xlu0 %607
    %v610 = vmul.f32 %v590, %v608
    %v612 = vrot.slane %v610, 6
    %613 = vrot.lane.b32.xlu0 %v612, 32
    %v614 = vpop.permute.xlu0 %613
    %v615 = vsel %vm192, %v614, 0
    %617 = vmatprep.subr.mxu0 0.0
    %618 = vmatpush1.msra.mxu0 %v181
    %619 = vmatprep.subr.mxu0 0.0
    %620 = vmatpush1.msra.mxu0 %v182
    %621 = vmatprep.subr.mxu0 0.0
    %622 = vmatpush1.msra.mxu0 %v183
    %623 = vmatprep.subr.mxu0 0.0
    %624 = vmatpush1.msra.mxu0 %v184
    %625 = vmatprep.subr.mxu0 0.0
    %626 = vmatpush1.msra.mxu0 0.0
    %627 = vmatprep.subr.mxu0 0.0
    %628 = vmatpush1.msra.mxu0 0.0
    %629 = vmatprep.subr.mxu0 0.0
    %630 = vmatpush1.msra.mxu0 0.0
    %631 = vmatprep.subr.mxu0 0.0
    %632 = vmatpush1.msra.mxu0 0.0
    %633 = vmatprep.subr.mxu0 0.0
    %634 = vmatpush1.msra.mxu0 0.0
    %635 = vmatprep.subr.mxu0 0.0
    %636 = vmatpush1.msra.mxu0 0.0
    %637 = vmatprep.subr.mxu0 0.0
    %638 = vmatpush1.msra.mxu0 0.0
    %639 = vmatprep.subr.mxu0 0.0
    %640 = vmatpush1.msra.mxu0 0.0
    %641 = vmatprep.subr.mxu0 0.0
    %642 = vmatpush1.msra.mxu0 0.0
    %643 = vmatprep.subr.mxu0 0.0
    %644 = vmatpush1.msra.mxu0 0.0
    %645 = vmatprep.subr.mxu0 0.0
    %646 = vmatpush1.msra.mxu0 0.0
    %647 = vmatprep.subr.mxu0 0.0
    %648 = vmatpush1.msra.mxu0 0.0
    %649 = vmatprep.subr.mxu0 0.0
    %650 = vmatpush1.msra.mxu0 0.0
    %651 = vmatprep.subr.mxu0 0.0
    %652 = vmatpush1.msra.mxu0 0.0
    %653 = vmatprep.subr.mxu0 0.0
    %654 = vmatpush1.msra.mxu0 0.0
    %655 = vmatprep.subr.mxu0 0.0
    %656 = vmatpush1.msra.mxu0 0.0
    %657 = vmatprep.subr.mxu0 0.0
    %658 = vmatpush1.msra.mxu0 0.0
    %659 = vmatprep.subr.mxu0 0.0
    %660 = vmatpush1.msra.mxu0 0.0
    %661 = vmatprep.subr.mxu0 0.0
    %662 = vmatpush1.msra.mxu0 0.0
    %663 = vmatprep.subr.mxu0 0.0
    %664 = vmatpush1.msra.mxu0 0.0
    %665 = vmatprep.subr.mxu0 0.0
    %666 = vmatpush1.msra.mxu0 0.0
    %667 = vmatprep.subr.mxu0 0.0
    %668 = vmatpush1.msra.mxu0 0.0
    %669 = vmatprep.subr.mxu0 0.0
    %670 = vmatpush1.msra.mxu0 0.0
    %671 = vmatprep.subr.mxu0 0.0
    %672 = vmatpush1.msra.mxu0 0.0
    %673 = vmatprep.subr.mxu0 0.0
    %674 = vmatpush1.msra.mxu0 0.0
    %675 = vmatprep.subr.mxu0 0.0
    %676 = vmatpush1.msra.mxu0 0.0
    %677 = vmatprep.subr.mxu0 0.0
    %678 = vmatpush1.msra.mxu0 0.0
    %679 = vmatprep.subr.mxu0 0.0
    %680 = vmatpush1.msra.mxu0 0.0
    %681 = vmatprep.mubr.f32.mxu0 0.0
    %682 = vmatmul.mubr.f32.gmra.mrb[0].mxu0 %v615
    %v683 = vpop.f32.mrb[0].mxu0
    %v684 = vadd.f32 0.0, %v683
    %v685 = vpop.f32.mrb[0].mxu0
    %686 = vdwg.mxu0
    %v687 = vadd.f32 %v178, %v684
    %v688 = vmul.f32 %v687, 0.5
    %v689 = vsel %vm189, %v687, %v688
    %v690 = vtanh.pop %v689
    %v691 = vmul.f32 %v690, 0.5
    %v692 = vadd.f32 %v691, 0.5
    %v693 = vsel %vm189, %v690, %v692
    %v695 = vrot.slane %v604, 6
    %v697 = vmul.f32 %v693, %v695
    %699 = vrot.lane.b32.xlu0 %v693, 64
    %v700 = vpop.permute.xlu0 %699
    %v702 = vmul.f32 %v693, %v700
    %704 = vrot.lane.b32.xlu0 %v702, 32
    %v705 = vpop.permute.xlu0 %704
    %v707 = vadd.f32 %v697, %v705
    %v708 = vtanh.pop %v707
    %710 = vrot.lane.b32.xlu0 %v708, 64
    %v711 = vpop.permute.xlu0 %710
    %v713 = vmul.f32 %v693, %v711
    %715 = vrot.lane.b32.xlu0 %v713, 32
    %v716 = vpop.permute.xlu0 %715
    %v717 = vsel %vm192, %v716, 0
    %719 = vmatprep.subr.mxu0 0.0
    %720 = vmatpush1.msra.mxu0 %v181
    %721 = vmatprep.subr.mxu0 0.0
    %722 = vmatpush1.msra.mxu0 %v182
    %723 = vmatprep.subr.mxu0 0.0
    %724 = vmatpush1.msra.mxu0 %v183
    %725 = vmatprep.subr.mxu0 0.0
    %726 = vmatpush1.msra.mxu0 %v184
    %727 = vmatprep.subr.mxu0 0.0
    %728 = vmatpush1.msra.mxu0 0.0
    %729 = vmatprep.subr.mxu0 0.0
    %730 = vmatpush1.msra.mxu0 0.0
    %731 = vmatprep.subr.mxu0 0.0
    %732 = vmatpush1.msra.mxu0 0.0
    %733 = vmatprep.subr.mxu0 0.0
    %734 = vmatpush1.msra.mxu0 0.0
    %735 = vmatprep.subr.mxu0 0.0
    %736 = vmatpush1.msra.mxu0 0.0
    %737 = vmatprep.subr.mxu0 0.0
    %738 = vmatpush1.msra.mxu0 0.0
    %739 = vmatprep.subr.mxu0 0.0
    %740 = vmatpush1.msra.mxu0 0.0
    %741 = vmatprep.subr.mxu0 0.0
    %742 = vmatpush1.msra.mxu0 0.0
    %743 = vmatprep.subr.mxu0 0.0
    %744 = vmatpush1.msra.mxu0 0.0
    %745 = vmatprep.subr.mxu0 0.0
    %746 = vmatpush1.msra.mxu0 0.0
    %747 = vmatprep.subr.mxu0 0.0
    %748 = vmatpush1.msra.mxu0 0.0
    %749 = vmatprep.subr.mxu0 0.0
    %750 = vmatpush1.msra.mxu0 0.0
    %751 = vmatprep.subr.mxu0 0.0
    %752 = vmatpush1.msra.mxu0 0.0
    %753 = vmatprep.subr.mxu0 0.0
    %754 = vmatpush1.msra.mxu0 0.0
    %755 = vmatprep.subr.mxu0 0.0
    %756 = vmatpush1.msra.mxu0 0.0
    %757 = vmatprep.subr.mxu0 0.0
    %758 = vmatpush1.msra.mxu0 0.0
    %759 = vmatprep.subr.mxu0 0.0
    %760 = vmatpush1.msra.mxu0 0.0
    %761 = vmatprep.subr.mxu0 0.0
    %762 = vmatpush1.msra.mxu0 0.0
    %763 = vmatprep.subr.mxu0 0.0
    %764 = vmatpush1.msra.mxu0 0.0
    %765 = vmatprep.subr.mxu0 0.0
    %766 = vmatpush1.msra.mxu0 0.0
    %767 = vmatprep.subr.mxu0 0.0
    %768 = vmatpush1.msra.mxu0 0.0
    %769 = vmatprep.subr.mxu0 0.0
    %770 = vmatpush1.msra.mxu0 0.0
    %771 = vmatprep.subr.mxu0 0.0
    %772 = vmatpush1.msra.mxu0 0.0
    %773 = vmatprep.subr.mxu0 0.0
    %774 = vmatpush1.msra.mxu0 0.0
    %775 = vmatprep.subr.mxu0 0.0
    %776 = vmatpush1.msra.mxu0 0.0
    %777 = vmatprep.subr.mxu0 0.0
    %778 = vmatpush1.msra.mxu0 0.0
    %779 = vmatprep.subr.mxu0 0.0
    %780 = vmatpush1.msra.mxu0 0.0
    %781 = vmatprep.subr.mxu0 0.0
    %782 = vmatpush1.msra.mxu0 0.0
    %783 = vmatprep.mubr.f32.mxu0 0.0
    %784 = vmatmul.mubr.f32.gmra.mrb[0].mxu0 %v717
    %v785 = vpop.f32.mrb[0].mxu0
    %v786 = vadd.f32 0.0, %v785
    %v787 = vpop.f32.mrb[0].mxu0
    %788 = vdwg.mxu0
    %v790 = vrot.slane %v786, 6
    %v792 = vadd.f32 %v178, %v790
    %v793 = vmul.f32 %v792, 0.5
    %v794 = vsel %vm189, %v792, %v793
    %v795 = vtanh.pop %v794
    %v796 = vmul.f32 %v795, 0.5
    %v797 = vadd.f32 %v796, 0.5
    %v798 = vsel %vm189, %v795, %v797
    %v800 = vrot.slane %v707, 6
    %v802 = vmul.f32 %v798, %v800
    %804 = vrot.lane.b32.xlu0 %v798, 64
    %v805 = vpop.permute.xlu0 %804
    %v807 = vmul.f32 %v798, %v805
    %809 = vrot.lane.b32.xlu0 %v807, 32
    %v810 = vpop.permute.xlu0 %809
    %v812 = vadd.f32 %v802, %v810
    %v813 = vtanh.pop %v812
    %815 = vrot.lane.b32.xlu0 %v813, 64
    %v816 = vpop.permute.xlu0 %815
    %v818 = vmul.f32 %v798, %v816
    %v820 = vrot.slane %v818, 2
    %821 = vrot.lane.b32.xlu0 %v820, 32
    %v822 = vpop.permute.xlu0 %821
    %v823 = vsel %vm192, %v822, 0
    %825 = vmatprep.subr.mxu0 0.0
    %826 = vmatpush1.msra.mxu0 %v181
    %827 = vmatprep.subr.mxu0 0.0
    %828 = vmatpush1.msra.mxu0 %v182
    %829 = vmatprep.subr.mxu0 0.0
    %830 = vmatpush1.msra.mxu0 %v183
    %831 = vmatprep.subr.mxu0 0.0
    %832 = vmatpush1.msra.mxu0 %v184
    %833 = vmatprep.subr.mxu0 0.0
    %834 = vmatpush1.msra.mxu0 0.0
    %835 = vmatprep.subr.mxu0 0.0
    %836 = vmatpush1.msra.mxu0 0.0
    %837 = vmatprep.subr.mxu0 0.0
    %838 = vmatpush1.msra.mxu0 0.0
    %839 = vmatprep.subr.mxu0 0.0
    %840 = vmatpush1.msra.mxu0 0.0
    %841 = vmatprep.subr.mxu0 0.0
    %842 = vmatpush1.msra.mxu0 0.0
    %843 = vmatprep.subr.mxu0 0.0
    %844 = vmatpush1.msra.mxu0 0.0
    %845 = vmatprep.subr.mxu0 0.0
    %846 = vmatpush1.msra.mxu0 0.0
    %847 = vmatprep.subr.mxu0 0.0
    %848 = vmatpush1.msra.mxu0 0.0
    %849 = vmatprep.subr.mxu0 0.0
    %850 = vmatpush1.msra.mxu0 0.0
    %851 = vmatprep.subr.mxu0 0.0
    %852 = vmatpush1.msra.mxu0 0.0
    %853 = vmatprep.subr.mxu0 0.0
    %854 = vmatpush1.msra.mxu0 0.0
    %855 = vmatprep.subr.mxu0 0.0
    %856 = vmatpush1.msra.mxu0 0.0
    %857 = vmatprep.subr.mxu0 0.0
    %858 = vmatpush1.msra.mxu0 0.0
    %859 = vmatprep.subr.mxu0 0.0
    %860 = vmatpush1.msra.mxu0 0.0
    %861 = vmatprep.subr.mxu0 0.0
    %862 = vmatpush1.msra.mxu0 0.0
    %863 = vmatprep.subr.mxu0 0.0
    %864 = vmatpush1.msra.mxu0 0.0
    %865 = vmatprep.subr.mxu0 0.0
    %866 = vmatpush1.msra.mxu0 0.0
    %867 = vmatprep.subr.mxu0 0.0
    %868 = vmatpush1.msra.mxu0 0.0
    %869 = vmatprep.subr.mxu0 0.0
    %870 = vmatpush1.msra.mxu0 0.0
    %871 = vmatprep.subr.mxu0 0.0
    %872 = vmatpush1.msra.mxu0 0.0
    %873 = vmatprep.subr.mxu0 0.0
    %874 = vmatpush1.msra.mxu0 0.0
    %875 = vmatprep.subr.mxu0 0.0
    %876 = vmatpush1.msra.mxu0 0.0
    %877 = vmatprep.subr.mxu0 0.0
    %878 = vmatpush1.msra.mxu0 0.0
    %879 = vmatprep.subr.mxu0 0.0
    %880 = vmatpush1.msra.mxu0 0.0
    %881 = vmatprep.subr.mxu0 0.0
    %882 = vmatpush1.msra.mxu0 0.0
    %883 = vmatprep.subr.mxu0 0.0
    %884 = vmatpush1.msra.mxu0 0.0
    %885 = vmatprep.subr.mxu0 0.0
    %886 = vmatpush1.msra.mxu0 0.0
    %887 = vmatprep.subr.mxu0 0.0
    %888 = vmatpush1.msra.mxu0 0.0
    %889 = vmatprep.mubr.f32.mxu0 0.0
    %890 = vmatmul.mubr.f32.gmra.mrb[0].mxu0 %v823
    %v891 = vpop.f32.mrb[0].mxu0
    %v892 = vadd.f32 0.0, %v891
    %v893 = vpop.f32.mrb[0].mxu0
    %894 = vdwg.mxu0
    %v896 = vrot.slane %v892, 4
    %v898 = vadd.f32 %v178, %v896
    %v899 = vmul.f32 %v898, 0.5
    %v900 = vsel %vm189, %v898, %v899
    %v901 = vtanh.pop %v900
    %v902 = vmul.f32 %v901, 0.5
    %v903 = vadd.f32 %v902, 0.5
    %v904 = vsel %vm189, %v901, %v903
    %v906 = vrot.slane %v812, 6
    %v908 = vmul.f32 %v904, %v906
    %910 = vrot.lane.b32.xlu0 %v904, 64
    %v911 = vpop.permute.xlu0 %910
    %v913 = vmul.f32 %v904, %v911
    %915 = vrot.lane.b32.xlu0 %v913, 32
    %v916 = vpop.permute.xlu0 %915
    %v918 = vadd.f32 %v908, %v916
    %v919 = vtanh.pop %v918
    %921 = vrot.lane.b32.xlu0 %v919, 64
    %v922 = vpop.permute.xlu0 %921
    %v924 = vmul.f32 %v904, %v922
    %v926 = vrot.slane %v924, 4
    %927 = vrot.lane.b32.xlu0 %v926, 32
    %v928 = vpop.permute.xlu0 %927
    %v929 = vsel %vm192, %v928, 0
    %931 = vmatprep.subr.mxu0 0.0
    %932 = vmatpush1.msra.mxu0 %v181
    %933 = vmatprep.subr.mxu0 0.0
    %934 = vmatpush1.msra.mxu0 %v182
    %935 = vmatprep.subr.mxu0 0.0
    %936 = vmatpush1.msra.mxu0 %v183
    %937 = vmatprep.subr.mxu0 0.0
    %938 = vmatpush1.msra.mxu0 %v184
    %939 = vmatprep.subr.mxu0 0.0
    %940 = vmatpush1.msra.mxu0 0.0
    %941 = vmatprep.subr.mxu0 0.0
    %942 = vmatpush1.msra.mxu0 0.0
    %943 = vmatprep.subr.mxu0 0.0
    %944 = vmatpush1.msra.mxu0 0.0
    %945 = vmatprep.subr.mxu0 0.0
    %946 = vmatpush1.msra.mxu0 0.0
    %947 = vmatprep.subr.mxu0 0.0
    %948 = vmatpush1.msra.mxu0 0.0
    %949 = vmatprep.subr.mxu0 0.0
    %950 = vmatpush1.msra.mxu0 0.0
    %951 = vmatprep.subr.mxu0 0.0
    %952 = vmatpush1.msra.mxu0 0.0
    %953 = vmatprep.subr.mxu0 0.0
    %954 = vmatpush1.msra.mxu0 0.0
    %955 = vmatprep.subr.mxu0 0.0
    %956 = vmatpush1.msra.mxu0 0.0
    %957 = vmatprep.subr.mxu0 0.0
    %958 = vmatpush1.msra.mxu0 0.0
    %959 = vmatprep.subr.mxu0 0.0
    %960 = vmatpush1.msra.mxu0 0.0
    %961 = vmatprep.subr.mxu0 0.0
    %962 = vmatpush1.msra.mxu0 0.0
    %963 = vmatprep.subr.mxu0 0.0
    %964 = vmatpush1.msra.mxu0 0.0
    %965 = vmatprep.subr.mxu0 0.0
    %966 = vmatpush1.msra.mxu0 0.0
    %967 = vmatprep.subr.mxu0 0.0
    %968 = vmatpush1.msra.mxu0 0.0
    %969 = vmatprep.subr.mxu0 0.0
    %970 = vmatpush1.msra.mxu0 0.0
    %971 = vmatprep.subr.mxu0 0.0
    %972 = vmatpush1.msra.mxu0 0.0
    %973 = vmatprep.subr.mxu0 0.0
    %974 = vmatpush1.msra.mxu0 0.0
    %975 = vmatprep.subr.mxu0 0.0
    %976 = vmatpush1.msra.mxu0 0.0
    %977 = vmatprep.subr.mxu0 0.0
    %978 = vmatpush1.msra.mxu0 0.0
    %979 = vmatprep.subr.mxu0 0.0
    %980 = vmatpush1.msra.mxu0 0.0
    %981 = vmatprep.subr.mxu0 0.0
    %982 = vmatpush1.msra.mxu0 0.0
    %983 = vmatprep.subr.mxu0 0.0
    %984 = vmatpush1.msra.mxu0 0.0
    %985 = vmatprep.subr.mxu0 0.0
    %986 = vmatpush1.msra.mxu0 0.0
    %987 = vmatprep.subr.mxu0 0.0
    %988 = vmatpush1.msra.mxu0 0.0
    %989 = vmatprep.subr.mxu0 0.0
    %990 = vmatpush1.msra.mxu0 0.0
    %991 = vmatprep.subr.mxu0 0.0
    %992 = vmatpush1.msra.mxu0 0.0
    %993 = vmatprep.subr.mxu0 0.0
    %994 = vmatpush1.msra.mxu0 0.0
    %995 = vmatprep.mubr.f32.mxu0 0.0
    %996 = vmatmul.mubr.f32.gmra.mrb[0].mxu0 %v929
    %v997 = vpop.f32.mrb[0].mxu0
    %v998 = vadd.f32 0.0, %v997
    %v999 = vpop.f32.mrb[0].mxu0
    %1000 = vdwg.mxu0
    %v1002 = vrot.slane %v998, 2
    %v1004 = vadd.f32 %v178, %v1002
    %v1005 = vmul.f32 %v1004, 0.5
    %v1006 = vsel %vm189, %v1004, %v1005
    %v1007 = vtanh.pop %v1006
    %v1008 = vmul.f32 %v1007, 0.5
    %v1009 = vadd.f32 %v1008, 0.5
    %v1010 = vsel %vm189, %v1007, %v1009
    %v1012 = vrot.slane %v918, 6
    %v1014 = vmul.f32 %v1010, %v1012
    %1016 = vrot.lane.b32.xlu0 %v1010, 64
    %v1017 = vpop.permute.xlu0 %1016
    %v1019 = vmul.f32 %v1010, %v1017
    %1021 = vrot.lane.b32.xlu0 %v1019, 32
    %v1022 = vpop.permute.xlu0 %1021
    %v1024 = vadd.f32 %v1014, %v1022
    %v1025 = vtanh.pop %v1024
    %1027 = vrot.lane.b32.xlu0 %v1025, 64
    %v1028 = vpop.permute.xlu0 %1027
    %v1030 = vmul.f32 %v1010, %v1028
    %1032 = vrot.lane.b32.xlu0 %v1030, 32
    %v1033 = vpop.permute.xlu0 %1032
    %s1035 = scalar_lea.vmem [#allocation10], 2
    %vm1036 = vcmask 261126
    %1037 = vst.msk [vmem:[%s1035 - $0x6] sm:$0xc0] %vm1036, %v1033
    %1039 = vrot.lane.b32.xlu0 %v1024, 96
    %v1040 = vpop.permute.xlu0 %1039
    %s1042 = scalar_lea.vmem [#allocation10], 4
    %1043 = vst.msk [vmem:[%s1042 - $0x6] sm:$0xc0] %vm1036, %v1040
    %vm1044 = vcmask 1041408
    %v1045 = vsel %vm1044, %v293, %v398
    %vm1046 = vcmask 1043456
    %v1047 = vsel %vm1046, %v1045, %v504
    %vm1048 = vcmask 1045504
    %v1049 = vsel %vm1048, %v1047, %v610
    %v1050 = vsel %vm1044, %v713, %v818
    %v1051 = vsel %vm1046, %v1050, %v924
    %v1052 = vsel %vm1048, %v1051, %v1030
    %v1053 = vld [vmem:[#allocation8] sm:$0xff]
    %v1054 = vld [vmem:[#allocation8 + $0x8] sm:$0xff]
    %v1055 = vld [vmem:[#allocation8 + $0x10] sm:$0xff]
    %v1056 = vld [vmem:[#allocation8 + $0x18] sm:$0xff]
    %v1057 = vld [vmem:[%s7] sm:$0x1]
    %v1059 = vlaneseq
    %v1060 = vshrl.u32 %v1059, 7
    %v1061 = vsub.s32 0, %v1060
    %v1062 = vrot.slane %v1057, %v1061
    %1066 = vrot.lane.b32.xlu0 %v1049, 32
    %v1067 = vpop.permute.xlu0 %1066
    %1068 = vrot.lane.b32.xlu0 %v1052, 32
    %v1069 = vpop.permute.xlu0 %1068
    %v1070 = vsel %vm192, %v1067, 0
    %v1072 = vsel %vm192, %v1069, 0
    %1074 = vmatprep.subr.mxu0 0.0
    %1075 = vmatpush1.msra.mxu0 %v1053
    %1076 = vmatprep.subr.mxu0 0.0
    %1077 = vmatpush1.msra.mxu0 %v1054
    %1078 = vmatprep.subr.mxu0 0.0
    %1079 = vmatpush1.msra.mxu0 %v1055
    %1080 = vmatprep.subr.mxu0 0.0
    %1081 = vmatpush1.msra.mxu0 %v1056
    %1082 = vmatprep.subr.mxu0 0.0
    %1083 = vmatpush1.msra.mxu0 0.0
    %1084 = vmatprep.subr.mxu0 0.0
    %1085 = vmatpush1.msra.mxu0 0.0
    %1086 = vmatprep.subr.mxu0 0.0
    %1087 = vmatpush1.msra.mxu0 0.0
    %1088 = vmatprep.subr.mxu0 0.0
    %1089 = vmatpush1.msra.mxu0 0.0
    %1090 = vmatprep.subr.mxu0 0.0
    %1091 = vmatpush1.msra.mxu0 0.0
    %1092 = vmatprep.subr.mxu0 0.0
    %1093 = vmatpush1.msra.mxu0 0.0
    %1094 = vmatprep.subr.mxu0 0.0
    %1095 = vmatpush1.msra.mxu0 0.0
    %1096 = vmatprep.subr.mxu0 0.0
    %1097 = vmatpush1.msra.mxu0 0.0
    %1098 = vmatprep.subr.mxu0 0.0
    %1099 = vmatpush1.msra.mxu0 0.0
    %1100 = vmatprep.subr.mxu0 0.0
    %1101 = vmatpush1.msra.mxu0 0.0
    %1102 = vmatprep.subr.mxu0 0.0
    %1103 = vmatpush1.msra.mxu0 0.0
    %1104 = vmatprep.subr.mxu0 0.0
    %1105 = vmatpush1.msra.mxu0 0.0
    %1106 = vmatprep.subr.mxu0 0.0
    %1107 = vmatpush1.msra.mxu0 0.0
    %1108 = vmatprep.subr.mxu0 0.0
    %1109 = vmatpush1.msra.mxu0 0.0
    %1110 = vmatprep.subr.mxu0 0.0
    %1111 = vmatpush1.msra.mxu0 0.0
    %1112 = vmatprep.subr.mxu0 0.0
    %1113 = vmatpush1.msra.mxu0 0.0
    %1114 = vmatprep.subr.mxu0 0.0
    %1115 = vmatpush1.msra.mxu0 0.0
    %1116 = vmatprep.subr.mxu0 0.0
    %1117 = vmatpush1.msra.mxu0 0.0
    %1118 = vmatprep.subr.mxu0 0.0
    %1119 = vmatpush1.msra.mxu0 0.0
    %1120 = vmatprep.subr.mxu0 0.0
    %1121 = vmatpush1.msra.mxu0 0.0
    %1122 = vmatprep.subr.mxu0 0.0
    %1123 = vmatpush1.msra.mxu0 0.0
    %1124 = vmatprep.subr.mxu0 0.0
    %1125 = vmatpush1.msra.mxu0 0.0
    %1126 = vmatprep.subr.mxu0 0.0
    %1127 = vmatpush1.msra.mxu0 0.0
    %1128 = vmatprep.subr.mxu0 0.0
    %1129 = vmatpush1.msra.mxu0 0.0
    %1130 = vmatprep.subr.mxu0 0.0
    %1131 = vmatpush1.msra.mxu0 0.0
    %1132 = vmatprep.subr.mxu0 0.0
    %1133 = vmatpush1.msra.mxu0 0.0
    %1134 = vmatprep.subr.mxu0 0.0
    %1135 = vmatpush1.msra.mxu0 0.0
    %1136 = vmatprep.subr.mxu0 0.0
    %1137 = vmatpush1.msra.mxu0 0.0
    %1138 = vmatprep.mubr.f32.mxu0 0.0
    %1139 = vmatmul.mubr.f32.gmra.mrb[0].mxu0 %v1070
    %v1140 = vpop.f32.mrb[0].mxu0
    %v1141 = vadd.f32 %v1062, %v1140
    %v1142 = vpop.f32.mrb[0].mxu0
    %1143 = vmatprep.mubr.f32.mxu0 0.0
    %1144 = vmatmul.mubr.f32.gmra.mrb[0].mxu0 %v1072
    %v1145 = vpop.f32.mrb[0].mxu0
    %v1146 = vadd.f32 %v1062, %v1145
    %v1147 = vpop.f32.mrb[0].mxu0
    %1148 = vdwg.mxu0
    %v1149 = vtanh.pop %v1141
    %v1150 = vtanh.pop %v1146
    %v1151 = vld [vmem:[%s8] sm:$0x1]
    %v1153 = vlaneseq
    %v1154 = vshrl.u32 %v1153, 7
    %v1155 = vsub.s32 0, %v1154
    %v1156 = vrot.slane %v1151, %v1155
    %v1158 = vmul.f32 %v1149, %v1156
    %v1159 = vmul.f32 %v1150, %v1156
    %v1160 = vsel %vm192, %v1158, 0.0
    %1161 = vadd.xlane.f32.xlu0 %v1160
    %v1162 = vpop.xlane.xlu0 %1161
    %v1163 = vsel %vm192, %v1159, 0.0
    %1164 = vadd.xlane.f32.xlu0 %v1163
    %v1165 = vpop.xlane.xlu0 %1164
    %v1166 = vtanh.pop %v1162
    %v1167 = vtanh.pop %v1165
    %v1168 = vmul.f32 %v1166, 1.442695
    %v1169 = vpow.pop %v1168
    %v1170 = vmul.f32 %v1167, 1.442695
    %v1171 = vpow.pop %v1170
    %v1172 = vlaneseq
    %v1173 = vshrl.u32 %v1172, 7
    %v1174 = vand.u32 %v186, 1
    %vm1175 = vcmp.eq.s32.totalorder %v1174, %v1173
    %v1176 = vsel %vm1175, 1, 0
    %v1177 = vcvt.s32.f32 %v1176
    %v1178 = vmul.f32 %v1169, %v1049
    %v1179 = vmul.f32 %v1171, %v1052
    %1182 = vrot.lane.b32.xlu0 %v1178, 32
    %v1183 = vpop.permute.xlu0 %1182
    %1184 = vrot.lane.b32.xlu0 %v1179, 32
    %v1185 = vpop.permute.xlu0 %1184
    %v1188 = vsel %vm192, %v1183, %v1169
    %v1189 = vsel %vm192, %v1185, %v1171
    %v1191 = vsel %vm99, %v1177, 0
    %1193 = vmatprep.subr.mxu0 0.0
    %1194 = vmatpush1.msra.mxu0 %v1188
    %1195 = vmatprep.subr.mxu0 0.0
    %1196 = vmatpush1.msra.mxu0 %v1189
    %1197 = vmatprep.subr.mxu0 0.0
    %1198 = vmatpush1.msra.mxu0 0.0
    %1199 = vmatprep.subr.mxu0 0.0
    %1200 = vmatpush1.msra.mxu0 0.0
    %1201 = vmatprep.subr.mxu0 0.0
    %1202 = vmatpush1.msra.mxu0 0.0
    %1203 = vmatprep.subr.mxu0 0.0
    %1204 = vmatpush1.msra.mxu0 0.0
    %1205 = vmatprep.subr.mxu0 0.0
    %1206 = vmatpush1.msra.mxu0 0.0
    %1207 = vmatprep.subr.mxu0 0.0
    %1208 = vmatpush1.msra.mxu0 0.0
    %1209 = vmatprep.subr.mxu0 0.0
    %1210 = vmatpush1.msra.mxu0 0.0
    %1211 = vmatprep.subr.mxu0 0.0
    %1212 = vmatpush1.msra.mxu0 0.0
    %1213 = vmatprep.subr.mxu0 0.0
    %1214 = vmatpush1.msra.mxu0 0.0
    %1215 = vmatprep.subr.mxu0 0.0
    %1216 = vmatpush1.msra.mxu0 0.0
    %1217 = vmatprep.subr.mxu0 0.0
    %1218 = vmatpush1.msra.mxu0 0.0
    %1219 = vmatprep.subr.mxu0 0.0
    %1220 = vmatpush1.msra.mxu0 0.0
    %1221 = vmatprep.subr.mxu0 0.0
    %1222 = vmatpush1.msra.mxu0 0.0
    %1223 = vmatprep.subr.mxu0 0.0
    %1224 = vmatpush1.msra.mxu0 0.0
    %1225 = vmatprep.subr.mxu0 0.0
    %1226 = vmatpush1.msra.mxu0 0.0
    %1227 = vmatprep.subr.mxu0 0.0
    %1228 = vmatpush1.msra.mxu0 0.0
    %1229 = vmatprep.subr.mxu0 0.0
    %1230 = vmatpush1.msra.mxu0 0.0
    %1231 = vmatprep.subr.mxu0 0.0
    %1232 = vmatpush1.msra.mxu0 0.0
    %1233 = vmatprep.subr.mxu0 0.0
    %1234 = vmatpush1.msra.mxu0 0.0
    %1235 = vmatprep.subr.mxu0 0.0
    %1236 = vmatpush1.msra.mxu0 0.0
    %1237 = vmatprep.subr.mxu0 0.0
    %1238 = vmatpush1.msra.mxu0 0.0
    %1239 = vmatprep.subr.mxu0 0.0
    %1240 = vmatpush1.msra.mxu0 0.0
    %1241 = vmatprep.subr.mxu0 0.0
    %1242 = vmatpush1.msra.mxu0 0.0
    %1243 = vmatprep.subr.mxu0 0.0
    %1244 = vmatpush1.msra.mxu0 0.0
    %1245 = vmatprep.subr.mxu0 0.0
    %1246 = vmatpush1.msra.mxu0 0.0
    %1247 = vmatprep.subr.mxu0 0.0
    %1248 = vmatpush1.msra.mxu0 0.0
    %1249 = vmatprep.subr.mxu0 0.0
    %1250 = vmatpush1.msra.mxu0 0.0
    %1251 = vmatprep.subr.mxu0 0.0
    %1252 = vmatpush1.msra.mxu0 0.0
    %1253 = vmatprep.subr.mxu0 0.0
    %1254 = vmatpush1.msra.mxu0 0.0
    %1255 = vmatprep.subr.mxu0 0.0
    %1256 = vmatpush1.msra.mxu0 0.0
    %1257 = vmatprep.mubr.f32.mxu0 0.0
    %1258 = vmatmul.mubr.f32.gmra.mrb[0].mxu0 %v1191
    %v1259 = vpop.f32.mrb[0].mxu0
    %v1260 = vadd.f32 0.0, %v1259
    %v1261 = vpop.f32.mrb[0].mxu0
    %1262 = vdwg.mxu0
    %1264 = vset.pattern.permute.xlu0 32
    %1265 = vperm.xlu0 %1264, %v1260
    %v1266 = vpop.permute.xlu0 %1265
    %v1268 = vrcp.pop %v1266
    %v1269 = vmul.f32 %v1260, %v1268
    %vm1270 = vcmask 254976
    %1271 = vst.msk [vmem:[#allocation10] sm:$0x3] %vm1270, %v1269
    // Predicated region
    $region54: #{tpu_custom_call.1} parent=1 // pred_check
      _
    $region55: #{tpu_custom_call.1} parent=1 // pred_check_branch
      %1273 = sbr.rel (0) target = $region57
    $region56: #{tpu_custom_call.1} parent=1 // pred_region
      %s1275 = ssub.s32 96, 96
      %1276 = vsyncadd [#allocation4], %s1275
      %s1277 = sshll.u32 [#allocation10], 4
      %s1278 = int_to_ptr.vmem [resolvable:$true] %s1277
      %1283 = dma.vmem_to_hbm [thread:$0]  %s1278, 96, %s9, [#allocation4], 32, 32, 2
    $region57: #{tpu_custom_call.1} parent=1 // pred_fallthru
      _
    // Predicated region
    $region58: #{tpu_custom_call.1} parent=1 // pred_check
      _
    $region59: #{tpu_custom_call.1} parent=1 // pred_check_branch
      %1285 = sbr.rel (0) target = $region61
    $region60: #{tpu_custom_call.1} parent=1 // pred_region
      %1286 = dma.done [#allocation4], 96
    $region61: #{tpu_custom_call.1} parent=1 // pred_fallthru
      _
    %1287 = vsyncpa [#allocation3], 1
    %1288 = vsyncpa [#allocation6], 1
    %1289 = vsyncpa [#allocation9], 1
    %1290 = vsyncpa [#allocation4], 1

</llo_original>
